<compile_context>
chip_gen: v7x
topology: tpu7x:2x2x1
jax: 0.10.0
libtpu: 0.0.40
codegen_flags: <defaults>
</compile_context>

<pallas_src>
import functools

import jax
import jax.numpy as jnp
from jax.experimental import pallas as pl
from jax.experimental.pallas import tpu as pltpu


def _round_up(n, m):
    return ((n + m - 1) // m) * m


def _vmem_capacity_bytes():
    """Per-core VMEM capacity; conservative (64 MiB) fallback if the query fails."""
    try:
        return int(pltpu.get_tpu_info().vmem_capacity_bytes)
    except Exception:  # capability probe only; assume the smallest-VMEM generation
        return 64 << 20


def _tile_vmem_bytes(tr, Wo, C, Cp, Cdp):
    tm = tr * Wo
    return (2 * (tr + 1) * (Wo + 1) * 4 * C * 2     # input slabs (2 buffers, bf16)
            + 2 * tm * Cp * 2                       # output tile (2 buffers, bf16)
            + tm * (2 * Cdp + Cp) * 4               # f32 intermediates
            + tm * 2 * Cdp * 2)                     # bf16 input of the fused final dot


def _pick_row_tile(Ho, Wo, C, Cp, Cdp, budget_bytes, min_tiles):
    """Output rows per grid step.  Must divide Ho; prefers sublane-friendly,
    VMEM-bounded tiles and enough tiles to feed both TensorCores."""
    divs = [d for d in range(1, Ho + 1) if Ho % d == 0]
    # hard requirement: output block sublane dim multiple of 8, or the full extent
    ok = [d for d in divs if (d * Wo) % 8 == 0 or d == Ho]
    fitting = [d for d in ok if _tile_vmem_bytes(d, Wo, C, Cp, Cdp) <= budget_bytes]
    cands = fitting if fitting else [min(ok)]

    def score(d):
        enough = 1 if (Ho // d) >= min_tiles else 0   # feed 2 TCs even when B == 1
        align = 1 if (d * Wo) % 16 == 0 else 0        # bf16 sublane packing
        return (enough, align, d)

    return max(cands, key=score)


def _attention_downsample_kernel(
    main_ref,    # [1, TR, Wo+1, 4C] bf16  phase-decomposed padded rows TR*t .. TR*t+TR-1
    halo_ref,    # [1, 1,  Wo+1, 4C] bf16  phase row TR*(t+1)  (the +1 row halo)
    gate_ref,    # [1, 2, Cdp] f32         per-batch hardsigmoid gate (branch1 | branch2)
    w1a_ref,     # [4C, Cdp] bf16  conv3x3 taps (0,0)(0,1)(1,0)(1,1)   (BN scale folded)
    w1b_ref,     # [2C, Cdp] bf16  taps (2,0)(2,1)
    w1c_ref,     # [C,  Cdp] bf16  tap  (0,2)
    w1d_ref,     # [C,  Cdp] bf16  tap  (1,2)
    w1e_ref,     # [C,  Cdp] bf16  tap  (2,2)
    b1_ref,      # [1, Cdp] f32
    w2_ref,      # [C, Cdp] bf16   1x1 conv after the 2x2 max-pool (BN scale folded)
    b2_ref,      # [1, Cdp] f32
    w3_ref,      # [2*Cdp, Cp] bf16 final 1x1 conv: branch1 rows stacked over branch2 rows
    b3_ref,      # [1, Cp] f32
    out_ref,     # [1, TR*Wo, Cp] bf16
    *, C, TR, Wo,
):
    f32 = jnp.float32
    bf16 = jnp.bfloat16
    T = TR * Wo

    def silu(t):
        # x*sigmoid(x) == 0.5*x*(1 + tanh(0.5*x)): one EUP push per element.
        # TODO(synk): on v6e/v7x compute the tanh in bf16 for 2x EUP throughput.
        return 0.5 * t * (1.0 + jnp.tanh(0.5 * t))

    # Phase slab layout: row a, col b, lane (2*py+px)*C + i  ==  x_pad[2*(r0+a)+py, 2*b+px, i]
    main = main_ref[0]                                    # rows r0 .. r0+TR-1   [TR, Wo+1, 4C]
    if TR > 1:                                            # rows r0+1 .. r0+TR   [TR, Wo+1, 4C]
        low = jnp.concatenate([main[1:TR], halo_ref[0]], axis=0)
    else:
        low = halo_ref[0]

    # ---- branch 1: 3x3 stride-2 conv (pad=1), grouped by (row, col) phase shift ----
    a00 = main[:, 0:Wo, :].reshape(T, 4 * C)                     # taps (0,0)(0,1)(1,0)(1,1)
    a01a = main[:, 1:Wo + 1, 0:C].reshape(T, C)                  # tap  (0,2)
    a01b = main[:, 1:Wo + 1, 2 * C:3 * C].reshape(T, C)          # tap  (1,2)
    a10 = low[:, 0:Wo, 0:2 * C].reshape(T, 2 * C)                # taps (2,0)(2,1)
    a11 = low[:, 1:Wo + 1, 0:C].reshape(T, C)                    # tap  (2,2)

    y1 = jnp.dot(a00, w1a_ref[...], preferred_element_type=f32)
    y1 = y1 + jnp.dot(a10, w1b_ref[...], preferred_element_type=f32)
    y1 = y1 + jnp.dot(a01a, w1c_ref[...], preferred_element_type=f32)
    y1 = y1 + jnp.dot(a01b, w1d_ref[...], preferred_element_type=f32)
    y1 = y1 + jnp.dot(a11, w1e_ref[...], preferred_element_type=f32)
    y1 = silu(y1 + b1_ref[...])                                  # [T, Cdp] f32

    # ---- branch 2: 2x2 stride-2 max-pool from the same slab, then 1x1 conv ----
    # pool window of output (r,c) = x[2r,2c], x[2r,2c+1], x[2r+1,2c], x[2r+1,2c+1]
    mp = jnp.maximum(
        jnp.maximum(main[:, 0:Wo, 3 * C:4 * C],                  # x[2r,   2c  ]
                    main[:, 1:Wo + 1, 2 * C:3 * C]),             # x[2r,   2c+1]
        jnp.maximum(low[:, 0:Wo, C:2 * C],                       # x[2r+1, 2c  ]
                    low[:, 1:Wo + 1, 0:C]),                      # x[2r+1, 2c+1]
    ).reshape(T, C)
    y2 = silu(jnp.dot(mp, w2_ref[...], preferred_element_type=f32) + b2_ref[...])

    # ---- channel gate + final 1x1 conv as a single K = 2*Cdp matmul ----
    g = gate_ref[0]                                              # [2, Cdp] f32
    ycat = jnp.concatenate([(y1 * g[0:1, :]).astype(bf16),
                            (y2 * g[1:2, :]).astype(bf16)], axis=-1)   # [T, 2*Cdp]
    y3 = jnp.dot(ycat, w3_ref[...], preferred_element_type=f32) + b3_ref[...]
    out_ref[0] = silu(y3).astype(out_ref.dtype)                  # [T, Cp] bf16


def attention_downsample(x_nchw, p):
    B, C, H, W = x_nchw.shape
    assert H % 2 == 0 and W % 2 == 0, "stride-2 downsample assumes even H, W"
    assert C % 2 == 0
    Ho, Wo = H // 2, W // 2
    Cd = C // 2
    Np = Ho * Wo
    LANE = 128
    Cp = _round_up(C, LANE)        # lane-dense output channels
    Cdp = _round_up(Cd, LANE)      # lane-dense branch channels
    bf16 = jnp.bfloat16
    f32 = jnp.float32

    x = jnp.transpose(x_nchw, (0, 2, 3, 1)).astype(f32)          # NHWC

    # ---- channel gate (tiny [B,C]x[C,C]; exact f32, hoisted out of the kernel) ----
    gavg = jnp.mean(x, axis=(1, 2))                              # [B, C]
    g = gavg @ p['wg'].T + p['bg']
    gate = jnp.clip(g / 6.0 + 0.5, 0.0, 1.0)                     # hardsigmoid
    gate2 = jnp.stack([gate[:, :Cd], gate[:, Cd:]], axis=1)      # [B, 2, Cd]
    gate2 = jnp.pad(gate2, ((0, 0), (0, 0), (0, Cdp - Cd))).astype(f32)

    # ---- pad=1 + 2x2 space-to-depth phase decomposition: one relayout pass (bf16)
    #      replacing the 2.25x im2col patch materialization of the 3x3/s2 conv ----
    xp = jnp.pad(x.astype(bf16), ((0, 0), (1, 1), (1, 1), (0, 0)))
    ph = xp.reshape(B, Ho + 1, 2, Wo + 1, 2, C)
    ph = jnp.transpose(ph, (0, 1, 3, 2, 4, 5)).reshape(B, Ho + 1, Wo + 1, 4 * C)

    # ---- parameters: fold BN scales into weight columns, pad to lane multiples ----
    def pad_cols(a):
        return jnp.pad(a, ((0, 0), (0, Cdp - a.shape[1]))).astype(bf16)

    wt = jnp.transpose(p['w1'], (2, 3, 1, 0)) * p['s1'][None, None, None, :]  # [3,3,C,Cd]
    w1a = pad_cols(jnp.concatenate([wt[0, 0], wt[0, 1], wt[1, 0], wt[1, 1]], axis=0))
    w1b = pad_cols(jnp.concatenate([wt[2, 0], wt[2, 1]], axis=0))
    w1c = pad_cols(wt[0, 2])
    w1d = pad_cols(wt[1, 2])
    w1e = pad_cols(wt[2, 2])
    b1 = jnp.pad(p['b1'], (0, Cdp - Cd)).reshape(1, Cdp).astype(f32)

    w2 = pad_cols(p['w2'].T * p['s2'][None, :])
    b2 = jnp.pad(p['b2'], (0, Cdp - Cd)).reshape(1, Cdp).astype(f32)

    w3t = p['w3'].T * p['s3'][None, :]                           # [C_in, C_out], s3 folded
    w3a = jnp.zeros((Cdp, Cp), f32).at[:Cd, :C].set(w3t[:Cd])
    w3b = jnp.zeros((Cdp, Cp), f32).at[:Cd, :C].set(w3t[Cd:])
    w3 = jnp.concatenate([w3a, w3b], axis=0).astype(bf16)        # [2*Cdp, Cp]
    b3 = jnp.pad(p['b3'], (0, Cp - C)).reshape(1, Cp).astype(f32)

    # ---- tiling: output rows per grid step, VMEM-generation aware ----
    cap = _vmem_capacity_bytes()
    tile_budget = max(2 << 20, min(16 << 20, cap // 8))
    TR = _pick_row_tile(Ho, Wo, C, Cp, Cdp, tile_budget,
                        min_tiles=1 if B >= 2 else 2)
    n_t = Ho // TR
    TM = TR * Wo

    fixed = (10 * C * Cdp + 2 * Cdp * Cp) * 2 * 2                # bf16 weights, 2 buffers
    fixed += ((2 * Cdp + Cp) + 2 * Cdp) * 4 * 2                  # f32 biases + gate
    est = _tile_vmem_bytes(TR, Wo, C, Cp, Cdp) + fixed
    hard_cap = min(64 << 20, (cap * 5) // 8)                     # ~40 MiB on 64 MiB parts
    vmem_limit = int(max(min(hard_cap, max(32 << 20, 2 * est)), est + (2 << 20)))

    kernel = functools.partial(_attention_downsample_kernel, C=C, TR=TR, Wo=Wo)

    grid_spec = pltpu.PrefetchScalarGridSpec(
        num_scalar_prefetch=0,
        grid=(B, n_t),
        in_specs=[
            pl.BlockSpec((1, TR, Wo + 1, 4 * C), lambda b, t: (b, t, 0, 0)),
            pl.BlockSpec((1, 1, Wo + 1, 4 * C),
                         lambda b, t, _TR=TR: (b, (t + 1) * _TR, 0, 0)),
            pl.BlockSpec((1, 2, Cdp), lambda b, t: (b, 0, 0)),
            pl.BlockSpec((4 * C, Cdp), lambda b, t: (0, 0)),
            pl.BlockSpec((2 * C, Cdp), lambda b, t: (0, 0)),
            pl.BlockSpec((C, Cdp), lambda b, t: (0, 0)),
            pl.BlockSpec((C, Cdp), lambda b, t: (0, 0)),
            pl.BlockSpec((C, Cdp), lambda b, t: (0, 0)),
            pl.BlockSpec((1, Cdp), lambda b, t: (0, 0)),
            pl.BlockSpec((C, Cdp), lambda b, t: (0, 0)),
            pl.BlockSpec((1, Cdp), lambda b, t: (0, 0)),
            pl.BlockSpec((2 * Cdp, Cp), lambda b, t: (0, 0)),
            pl.BlockSpec((1, Cp), lambda b, t: (0, 0)),
        ],
        out_specs=pl.BlockSpec((1, TM, Cp), lambda b, t: (b, t, 0)),
    )

    out_pad = pl.pallas_call(
        kernel,
        out_shape=jax.ShapeDtypeStruct((B, Np, Cp), jnp.bfloat16),
        grid_spec=grid_spec,
        compiler_params=pltpu.CompilerParams(
            dimension_semantics=("parallel", "parallel"),
            vmem_limit_bytes=vmem_limit),
    )(ph, ph, gate2, w1a, w1b, w1c, w1d, w1e, b1, w2, b2, w3, b3)

    # TODO(synk): emit NHWC bf16 directly to a fused consumer; the slice + NCHW
    # transpose below is one extra (cheap, bf16-read) pass kept only to match the
    # module's NCHW float output contract.
    out = out_pad[:, :, :C].astype(f32).reshape(B, Ho, Wo, C)
    return jnp.transpose(out, (0, 3, 1, 2))                      # back to NCHW


def init_params(key, C):
    """Deterministic synthetic parameters matching the module's shapes (BN folded)."""
    Cd = C // 2
    ks = jax.random.split(key, 8)

    def rnd(k, shp, s=0.1):
        return (s * jax.random.normal(k, shp)).astype(jnp.float32)

    def bn_fold(k, n, eps=1e-5):
        k1, k2, k3, k4 = jax.random.split(k, 4)
        gamma = 1.0 + 0.1 * jax.random.normal(k1, (n,))
        beta = 0.1 * jax.random.normal(k2, (n,))
        mean = 0.1 * jax.random.normal(k3, (n,))
        var = 1.0 + jnp.abs(0.1 * jax.random.normal(k4, (n,)))
        scale = gamma / jnp.sqrt(var + eps)
        bias = beta - mean * scale
        return scale.astype(jnp.float32), bias.astype(jnp.float32)

    wg = rnd(ks[0], (C, C))            # gate Conv2d(C, C, 1) weight [out, in]
    bg = rnd(ks[1], (C,))              # gate bias
    w1 = rnd(ks[2], (Cd, C, 3, 3))     # down_branch1 conv weight [out, in, kh, kw]
    s1, b1 = bn_fold(ks[3], Cd)
    w2 = rnd(ks[4], (Cd, C))           # down_branch2 1x1 conv weight [out, in]
    s2, b2 = bn_fold(ks[5], Cd)
    w3 = rnd(ks[6], (C, C))            # final 1x1 conv weight [out, in]
    s3, b3 = bn_fold(ks[7], C)
    return dict(wg=wg, bg=bg, w1=w1, s1=s1, b1=b1,
                w2=w2, s2=s2, b2=b2, w3=w3, s3=s3, b3=b3)


def reference(x_nchw, p):
    """Pure-JAX (XLA, f32) reference mirroring the PyTorch forward (eval-mode BN)."""
    x = x_nchw.astype(jnp.float32)
    silu = lambda t: t * jax.nn.sigmoid(t)
    gavg = jnp.mean(x, axis=(2, 3), keepdims=True)
    g = jnp.einsum('oc,bcij->boij', p['wg'], gavg) + p['bg'][None, :, None, None]
    gate = jnp.clip(g / 6.0 + 0.5, 0.0, 1.0)
    y1 = jax.lax.conv_general_dilated(
        x, p['w1'], window_strides=(2, 2), padding=((1, 1), (1, 1)),
        dimension_numbers=('NCHW', 'OIHW', 'NCHW'))
    y1 = silu(y1 * p['s1'][None, :, None, None] + p['b1'][None, :, None, None])
    mp = jax.lax.reduce_window(x, -jnp.inf, jax.lax.max,
                               (1, 1, 2, 2), (1, 1, 2, 2), 'VALID')
    y2 = jnp.einsum('oc,bchw->bohw', p['w2'], mp)
    y2 = silu(y2 * p['s2'][None, :, None, None] + p['b2'][None, :, None, None])
    xcat = jnp.concatenate([y1, y2], axis=1) * gate
    y3 = jnp.einsum('oc,bchw->bohw', p['w3'], xcat)
    return silu(y3 * p['s3'][None, :, None, None] + p['b3'][None, :, None, None])


if __name__ == "__main__":
    key = jax.random.PRNGKey(0)
    kx, kp = jax.random.split(key)
    B, C, H, W = 2, 8, 16, 16
    x = jax.random.normal(kx, (B, C, H, W), dtype=jnp.float32)
    params = init_params(kp, C)

    out = jax.block_until_ready(attention_downsample(x, params))
    ref = jax.block_until_ready(reference(x, params))

    assert out.shape == (B, C, H // 2, W // 2), out.shape
    max_err = float(jnp.max(jnp.abs(out - ref)))
    # bf16 activations/weights/output inside the kernel vs a full-f32 reference.
    assert jnp.allclose(out, ref, atol=2.5e-2, rtol=2.5e-2), f"max_err={max_err}"
    print("KERNEL_OK")
</pallas_src>

<mosaic_0001>
module attributes {stable_mosaic.version = 11 : i64} {
  func.func @_attention_downsample_kernel(%arg0: i32, %arg1: i32, %arg2: memref<1x8x9x32xbf16, #tpu.memory_space<vmem>>, %arg3: memref<1x1x9x32xbf16, #tpu.memory_space<vmem>>, %arg4: memref<1x2x128xf32, #tpu.memory_space<vmem>>, %arg5: memref<32x128xbf16, #tpu.memory_space<vmem>>, %arg6: memref<16x128xbf16, #tpu.memory_space<vmem>>, %arg7: memref<8x128xbf16, #tpu.memory_space<vmem>>, %arg8: memref<8x128xbf16, #tpu.memory_space<vmem>>, %arg9: memref<8x128xbf16, #tpu.memory_space<vmem>>, %arg10: memref<1x128xf32, #tpu.memory_space<vmem>>, %arg11: memref<8x128xbf16, #tpu.memory_space<vmem>>, %arg12: memref<1x128xf32, #tpu.memory_space<vmem>>, %arg13: memref<256x128xbf16, #tpu.memory_space<vmem>>, %arg14: memref<1x128xf32, #tpu.memory_space<vmem>>, %arg15: memref<1x64x128xbf16, #tpu.memory_space<vmem>>) attributes {dimension_semantics = [#tpu.dimension_semantics<parallel>, #tpu.dimension_semantics<parallel>], iteration_bounds = array<i64: 2, 1>, scalar_prefetch = 0 : i64, scratch_operands = 0 : i64, tpu.core_type = #tpu.core_type<tc>, window_params = [{transform_indices = @transform_0, window_bounds = array<i64: 1, 8, 9, 32>}, {transform_indices = @transform_1, window_bounds = array<i64: 1, 1, 9, 32>}, {transform_indices = @transform_2, window_bounds = array<i64: 1, 2, 128>}, {pipeline_mode = #tpu.pipeline_mode<synchronous>, transform_indices = @transform_3, window_bounds = array<i64: 32, 128>}, {pipeline_mode = #tpu.pipeline_mode<synchronous>, transform_indices = @transform_4, window_bounds = array<i64: 16, 128>}, {pipeline_mode = #tpu.pipeline_mode<synchronous>, transform_indices = @transform_5, window_bounds = array<i64: 8, 128>}, {pipeline_mode = #tpu.pipeline_mode<synchronous>, transform_indices = @transform_6, window_bounds = array<i64: 8, 128>}, {pipeline_mode = #tpu.pipeline_mode<synchronous>, transform_indices = @transform_7, window_bounds = array<i64: 8, 128>}, {pipeline_mode = #tpu.pipeline_mode<synchronous>, transform_indices = @transform_8, window_bounds = array<i64: 1, 128>}, {pipeline_mode = #tpu.pipeline_mode<synchronous>, transform_indices = @transform_9, window_bounds = array<i64: 8, 128>}, {pipeline_mode = #tpu.pipeline_mode<synchronous>, transform_indices = @transform_10, window_bounds = array<i64: 1, 128>}, {pipeline_mode = #tpu.pipeline_mode<synchronous>, transform_indices = @transform_11, window_bounds = array<i64: 256, 128>}, {pipeline_mode = #tpu.pipeline_mode<synchronous>, transform_indices = @transform_12, window_bounds = array<i64: 1, 128>}, {transform_indices = @transform_13, window_bounds = array<i64: 1, 64, 128>}]} {
    %c0 = arith.constant 0 : index
    %c0_0 = arith.constant 0 : index
    %c0_1 = arith.constant 0 : index
    %c0_2 = arith.constant 0 : index
    %0 = vector.load %arg2[%c0, %c0_0, %c0_1, %c0_2] : memref<1x8x9x32xbf16, #tpu.memory_space<vmem>>, vector<1x8x9x32xbf16>
    %1 = vector.shape_cast %0 : vector<1x8x9x32xbf16> to vector<8x9x32xbf16>
    %2 = vector.extract_strided_slice %1 {offsets = [1, 0, 0], sizes = [7, 9, 32], strides = [1, 1, 1]} : vector<8x9x32xbf16> to vector<7x9x32xbf16>
    %c0_3 = arith.constant 0 : index
    %c0_4 = arith.constant 0 : index
    %c0_5 = arith.constant 0 : index
    %c0_6 = arith.constant 0 : index
    %3 = vector.load %arg3[%c0_3, %c0_4, %c0_5, %c0_6] : memref<1x1x9x32xbf16, #tpu.memory_space<vmem>>, vector<1x1x9x32xbf16>
    %4 = vector.shape_cast %3 : vector<1x1x9x32xbf16> to vector<1x9x32xbf16>
    %5 = tpu.concatenate %2, %4 in 0 : vector<7x9x32xbf16>, vector<1x9x32xbf16> -> vector<8x9x32xbf16>
    %6 = vector.extract_strided_slice %1 {offsets = [0, 0, 0], sizes = [8, 8, 32], strides = [1, 1, 1]} : vector<8x9x32xbf16> to vector<8x8x32xbf16>
    %7 = vector.shape_cast %6 : vector<8x8x32xbf16> to vector<64x32xbf16>
    %8 = vector.extract_strided_slice %1 {offsets = [0, 1, 0], sizes = [8, 8, 8], strides = [1, 1, 1]} : vector<8x9x32xbf16> to vector<8x8x8xbf16>
    %9 = vector.shape_cast %8 : vector<8x8x8xbf16> to vector<64x8xbf16>
    %10 = vector.extract_strided_slice %1 {offsets = [0, 1, 16], sizes = [8, 8, 8], strides = [1, 1, 1]} : vector<8x9x32xbf16> to vector<8x8x8xbf16>
    %11 = vector.shape_cast %10 : vector<8x8x8xbf16> to vector<64x8xbf16>
    %12 = vector.extract_strided_slice %5 {offsets = [0, 0, 0], sizes = [8, 8, 16], strides = [1, 1, 1]} : vector<8x9x32xbf16> to vector<8x8x16xbf16>
    %13 = vector.shape_cast %12 : vector<8x8x16xbf16> to vector<64x16xbf16>
    %14 = vector.extract_strided_slice %5 {offsets = [0, 1, 0], sizes = [8, 8, 8], strides = [1, 1, 1]} : vector<8x9x32xbf16> to vector<8x8x8xbf16>
    %15 = vector.shape_cast %14 : vector<8x8x8xbf16> to vector<64x8xbf16>
    %c0_7 = arith.constant 0 : index
    %c0_8 = arith.constant 0 : index
    %16 = vector.load %arg5[%c0_7, %c0_8] : memref<32x128xbf16, #tpu.memory_space<vmem>>, vector<32x128xbf16>
    %cst = arith.constant dense<0.000000e+00> : vector<64x128xf32>
    %17 = tpu.matmul %7, %16, %cst {dimension_numbers = #tpu.dot_dimension_numbers<[1], [0], [0], [1], [0, 0, 1, 1], [], []>} : vector<64x32xbf16>, vector<32x128xbf16>, vector<64x128xf32> -> vector<64x128xf32>
    %c0_9 = arith.constant 0 : index
    %c0_10 = arith.constant 0 : index
    %18 = vector.load %arg6[%c0_9, %c0_10] : memref<16x128xbf16, #tpu.memory_space<vmem>>, vector<16x128xbf16>
    %cst_11 = arith.constant dense<0.000000e+00> : vector<64x128xf32>
    %19 = tpu.matmul %13, %18, %cst_11 {dimension_numbers = #tpu.dot_dimension_numbers<[1], [0], [0], [1], [0, 0, 1, 1], [], []>} : vector<64x16xbf16>, vector<16x128xbf16>, vector<64x128xf32> -> vector<64x128xf32>
    %20 = arith.addf %17, %19 : vector<64x128xf32>
    %c0_12 = arith.constant 0 : index
    %c0_13 = arith.constant 0 : index
    %21 = vector.load %arg7[%c0_12, %c0_13] : memref<8x128xbf16, #tpu.memory_space<vmem>>, vector<8x128xbf16>
    %cst_14 = arith.constant dense<0.000000e+00> : vector<64x128xf32>
    %22 = tpu.matmul %9, %21, %cst_14 {dimension_numbers = #tpu.dot_dimension_numbers<[1], [0], [0], [1], [0, 0, 1, 1], [], []>} : vector<64x8xbf16>, vector<8x128xbf16>, vector<64x128xf32> -> vector<64x128xf32>
    %23 = arith.addf %20, %22 : vector<64x128xf32>
    %c0_15 = arith.constant 0 : index
    %c0_16 = arith.constant 0 : index
    %24 = vector.load %arg8[%c0_15, %c0_16] : memref<8x128xbf16, #tpu.memory_space<vmem>>, vector<8x128xbf16>
    %cst_17 = arith.constant dense<0.000000e+00> : vector<64x128xf32>
    %25 = tpu.matmul %11, %24, %cst_17 {dimension_numbers = #tpu.dot_dimension_numbers<[1], [0], [0], [1], [0, 0, 1, 1], [], []>} : vector<64x8xbf16>, vector<8x128xbf16>, vector<64x128xf32> -> vector<64x128xf32>
    %26 = arith.addf %23, %25 : vector<64x128xf32>
    %c0_18 = arith.constant 0 : index
    %c0_19 = arith.constant 0 : index
    %27 = vector.load %arg9[%c0_18, %c0_19] : memref<8x128xbf16, #tpu.memory_space<vmem>>, vector<8x128xbf16>
    %cst_20 = arith.constant dense<0.000000e+00> : vector<64x128xf32>
    %28 = tpu.matmul %15, %27, %cst_20 {dimension_numbers = #tpu.dot_dimension_numbers<[1], [0], [0], [1], [0, 0, 1, 1], [], []>} : vector<64x8xbf16>, vector<8x128xbf16>, vector<64x128xf32> -> vector<64x128xf32>
    %29 = arith.addf %26, %28 : vector<64x128xf32>
    %c0_21 = arith.constant 0 : index
    %c0_22 = arith.constant 0 : index
    %30 = vector.load %arg10[%c0_21, %c0_22] : memref<1x128xf32, #tpu.memory_space<vmem>>, vector<1x128xf32>
    %31 = vector.broadcast %30 : vector<1x128xf32> to vector<64x128xf32>
    %32 = arith.addf %29, %31 : vector<64x128xf32>
    %cst_23 = arith.constant 5.000000e-01 : f32
    %33 = vector.broadcast %cst_23 : f32 to vector<64x128xf32>
    %34 = arith.mulf %33, %32 : vector<64x128xf32>
    %cst_24 = arith.constant 5.000000e-01 : f32
    %35 = vector.broadcast %cst_24 : f32 to vector<64x128xf32>
    %36 = arith.mulf %35, %32 : vector<64x128xf32>
    %37 = math.tanh %36 : vector<64x128xf32>
    %cst_25 = arith.constant 1.000000e+00 : f32
    %38 = vector.broadcast %cst_25 : f32 to vector<64x128xf32>
    %39 = arith.addf %38, %37 : vector<64x128xf32>
    %40 = arith.mulf %34, %39 : vector<64x128xf32>
    %41 = vector.extract_strided_slice %1 {offsets = [0, 0, 24], sizes = [8, 8, 8], strides = [1, 1, 1]} : vector<8x9x32xbf16> to vector<8x8x8xbf16>
    %42 = vector.extract_strided_slice %1 {offsets = [0, 1, 16], sizes = [8, 8, 8], strides = [1, 1, 1]} : vector<8x9x32xbf16> to vector<8x8x8xbf16>
    %43 = arith.maximumf %41, %42 : vector<8x8x8xbf16>
    %44 = vector.extract_strided_slice %5 {offsets = [0, 0, 8], sizes = [8, 8, 8], strides = [1, 1, 1]} : vector<8x9x32xbf16> to vector<8x8x8xbf16>
    %45 = vector.extract_strided_slice %5 {offsets = [0, 1, 0], sizes = [8, 8, 8], strides = [1, 1, 1]} : vector<8x9x32xbf16> to vector<8x8x8xbf16>
    %46 = arith.maximumf %44, %45 : vector<8x8x8xbf16>
    %47 = arith.maximumf %43, %46 : vector<8x8x8xbf16>
    %48 = vector.shape_cast %47 : vector<8x8x8xbf16> to vector<64x8xbf16>
    %c0_26 = arith.constant 0 : index
    %c0_27 = arith.constant 0 : index
    %49 = vector.load %arg11[%c0_26, %c0_27] : memref<8x128xbf16, #tpu.memory_space<vmem>>, vector<8x128xbf16>
    %cst_28 = arith.constant dense<0.000000e+00> : vector<64x128xf32>
    %50 = tpu.matmul %48, %49, %cst_28 {dimension_numbers = #tpu.dot_dimension_numbers<[1], [0], [0], [1], [0, 0, 1, 1], [], []>} : vector<64x8xbf16>, vector<8x128xbf16>, vector<64x128xf32> -> vector<64x128xf32>
    %c0_29 = arith.constant 0 : index
    %c0_30 = arith.constant 0 : index
    %51 = vector.load %arg12[%c0_29, %c0_30] : memref<1x128xf32, #tpu.memory_space<vmem>>, vector<1x128xf32>
    %52 = vector.broadcast %51 : vector<1x128xf32> to vector<64x128xf32>
    %53 = arith.addf %50, %52 : vector<64x128xf32>
    %cst_31 = arith.constant 5.000000e-01 : f32
    %54 = vector.broadcast %cst_31 : f32 to vector<64x128xf32>
    %55 = arith.mulf %54, %53 : vector<64x128xf32>
    %cst_32 = arith.constant 5.000000e-01 : f32
    %56 = vector.broadcast %cst_32 : f32 to vector<64x128xf32>
    %57 = arith.mulf %56, %53 : vector<64x128xf32>
    %58 = math.tanh %57 : vector<64x128xf32>
    %cst_33 = arith.constant 1.000000e+00 : f32
    %59 = vector.broadcast %cst_33 : f32 to vector<64x128xf32>
    %60 = arith.addf %59, %58 : vector<64x128xf32>
    %61 = arith.mulf %55, %60 : vector<64x128xf32>
    %c0_34 = arith.constant 0 : index
    %c0_35 = arith.constant 0 : index
    %c0_36 = arith.constant 0 : index
    %62 = vector.load %arg4[%c0_34, %c0_35, %c0_36] : memref<1x2x128xf32, #tpu.memory_space<vmem>>, vector<1x2x128xf32>
    %63 = vector.shape_cast %62 : vector<1x2x128xf32> to vector<2x128xf32>
    %64 = vector.extract_strided_slice %63 {offsets = [0, 0], sizes = [1, 128], strides = [1, 1]} : vector<2x128xf32> to vector<1x128xf32>
    %65 = vector.broadcast %64 : vector<1x128xf32> to vector<64x128xf32>
    %66 = arith.mulf %40, %65 : vector<64x128xf32>
    %67 = arith.truncf %66 : vector<64x128xf32> to vector<64x128xbf16>
    %68 = vector.extract_strided_slice %63 {offsets = [1, 0], sizes = [1, 128], strides = [1, 1]} : vector<2x128xf32> to vector<1x128xf32>
    %69 = vector.broadcast %68 : vector<1x128xf32> to vector<64x128xf32>
    %70 = arith.mulf %61, %69 : vector<64x128xf32>
    %71 = arith.truncf %70 : vector<64x128xf32> to vector<64x128xbf16>
    %72 = tpu.concatenate %67, %71 in 1 : vector<64x128xbf16>, vector<64x128xbf16> -> vector<64x256xbf16>
    %c0_37 = arith.constant 0 : index
    %c0_38 = arith.constant 0 : index
    %73 = vector.load %arg13[%c0_37, %c0_38] : memref<256x128xbf16, #tpu.memory_space<vmem>>, vector<256x128xbf16>
    %cst_39 = arith.constant dense<0.000000e+00> : vector<64x128xf32>
    %74 = tpu.matmul %72, %73, %cst_39 {dimension_numbers = #tpu.dot_dimension_numbers<[1], [0], [0], [1], [0, 0, 1, 1], [], []>} : vector<64x256xbf16>, vector<256x128xbf16>, vector<64x128xf32> -> vector<64x128xf32>
    %c0_40 = arith.constant 0 : index
    %c0_41 = arith.constant 0 : index
    %75 = vector.load %arg14[%c0_40, %c0_41] : memref<1x128xf32, #tpu.memory_space<vmem>>, vector<1x128xf32>
    %76 = vector.broadcast %75 : vector<1x128xf32> to vector<64x128xf32>
    %77 = arith.addf %74, %76 : vector<64x128xf32>
    %cst_42 = arith.constant 5.000000e-01 : f32
    %78 = vector.broadcast %cst_42 : f32 to vector<64x128xf32>
    %79 = arith.mulf %78, %77 : vector<64x128xf32>
    %cst_43 = arith.constant 5.000000e-01 : f32
    %80 = vector.broadcast %cst_43 : f32 to vector<64x128xf32>
    %81 = arith.mulf %80, %77 : vector<64x128xf32>
    %82 = math.tanh %81 : vector<64x128xf32>
    %cst_44 = arith.constant 1.000000e+00 : f32
    %83 = vector.broadcast %cst_44 : f32 to vector<64x128xf32>
    %84 = arith.addf %83, %82 : vector<64x128xf32>
    %85 = arith.mulf %79, %84 : vector<64x128xf32>
    %86 = arith.truncf %85 : vector<64x128xf32> to vector<64x128xbf16>
    %c0_45 = arith.constant 0 : index
    %c0_46 = arith.constant 0 : index
    %c0_47 = arith.constant 0 : index
    %87 = vector.load %arg15[%c0_45, %c0_46, %c0_47] : memref<1x64x128xbf16, #tpu.memory_space<vmem>>, vector<1x64x128xbf16>
    %88 = vector.shape_cast %87 : vector<1x64x128xbf16> to vector<64x128xbf16>
    %89 = vector.shape_cast %86 : vector<64x128xbf16> to vector<1x64x128xbf16>
    tpu.vector_store %arg15[%c0_45, %c0_46, %c0_47], %89 {strides = array<i32>} : memref<1x64x128xbf16, #tpu.memory_space<vmem>>, vector<1x64x128xbf16>,
    return
  }
  func.func @transform_0(%arg0: i32, %arg1: i32) -> (i32, i32, i32, i32) {
    %c0_i32 = arith.constant 0 : i32
    %c0_i32_0 = arith.constant 0 : i32
    %c0_i32_1 = arith.constant 0 : i32
    return %arg0, %arg1, %c0_i32, %c0_i32_0 : i32, i32, i32, i32
  }
  func.func @transform_1(%arg0: i32, %arg1: i32) -> (i32, i32, i32, i32) {
    %c1_i32 = arith.constant 1 : i32
    %0 = arith.addi %arg1, %c1_i32 : i32
    %c8_i32 = arith.constant 8 : i32
    %1 = arith.muli %0, %c8_i32 : i32
    %c0_i32 = arith.constant 0 : i32
    %c0_i32_0 = arith.constant 0 : i32
    %c0_i32_1 = arith.constant 0 : i32
    return %arg0, %1, %c0_i32, %c0_i32_0 : i32, i32, i32, i32
  }
  func.func @transform_2(%arg0: i32, %arg1: i32) -> (i32, i32, i32) {
    %c0_i32 = arith.constant 0 : i32
    %c0_i32_0 = arith.constant 0 : i32
    %c0_i32_1 = arith.constant 0 : i32
    return %arg0, %c0_i32, %c0_i32_0 : i32, i32, i32
  }
  func.func @transform_3(%arg0: i32, %arg1: i32) -> (i32, i32) {
    %c0_i32 = arith.constant 0 : i32
    %c0_i32_0 = arith.constant 0 : i32
    %c0_i32_1 = arith.constant 0 : i32
    return %c0_i32, %c0_i32_0 : i32, i32
  }
  func.func @transform_4(%arg0: i32, %arg1: i32) -> (i32, i32) {
    %c0_i32 = arith.constant 0 : i32
    %c0_i32_0 = arith.constant 0 : i32
    %c0_i32_1 = arith.constant 0 : i32
    return %c0_i32, %c0_i32_0 : i32, i32
  }
  func.func @transform_5(%arg0: i32, %arg1: i32) -> (i32, i32) {
    %c0_i32 = arith.constant 0 : i32
    %c0_i32_0 = arith.constant 0 : i32
    %c0_i32_1 = arith.constant 0 : i32
    return %c0_i32, %c0_i32_0 : i32, i32
  }
  func.func @transform_6(%arg0: i32, %arg1: i32) -> (i32, i32) {
    %c0_i32 = arith.constant 0 : i32
    %c0_i32_0 = arith.constant 0 : i32
    %c0_i32_1 = arith.constant 0 : i32
    return %c0_i32, %c0_i32_0 : i32, i32
  }
  func.func @transform_7(%arg0: i32, %arg1: i32) -> (i32, i32) {
    %c0_i32 = arith.constant 0 : i32
    %c0_i32_0 = arith.constant 0 : i32
    %c0_i32_1 = arith.constant 0 : i32
    return %c0_i32, %c0_i32_0 : i32, i32
  }
  func.func @transform_8(%arg0: i32, %arg1: i32) -> (i32, i32) {
    %c0_i32 = arith.constant 0 : i32
    %c0_i32_0 = arith.constant 0 : i32
    %c0_i32_1 = arith.constant 0 : i32
    return %c0_i32, %c0_i32_0 : i32, i32
  }
  func.func @transform_9(%arg0: i32, %arg1: i32) -> (i32, i32) {
    %c0_i32 = arith.constant 0 : i32
    %c0_i32_0 = arith.constant 0 : i32
    %c0_i32_1 = arith.constant 0 : i32
    return %c0_i32, %c0_i32_0 : i32, i32
  }
  func.func @transform_10(%arg0: i32, %arg1: i32) -> (i32, i32) {
    %c0_i32 = arith.constant 0 : i32
    %c0_i32_0 = arith.constant 0 : i32
    %c0_i32_1 = arith.constant 0 : i32
    return %c0_i32, %c0_i32_0 : i32, i32
  }
  func.func @transform_11(%arg0: i32, %arg1: i32) -> (i32, i32) {
    %c0_i32 = arith.constant 0 : i32
    %c0_i32_0 = arith.constant 0 : i32
    %c0_i32_1 = arith.constant 0 : i32
    return %c0_i32, %c0_i32_0 : i32, i32
  }
  func.func @transform_12(%arg0: i32, %arg1: i32) -> (i32, i32) {
    %c0_i32 = arith.constant 0 : i32
    %c0_i32_0 = arith.constant 0 : i32
    %c0_i32_1 = arith.constant 0 : i32
    return %c0_i32, %c0_i32_0 : i32, i32
  }
  func.func @transform_13(%arg0: i32, %arg1: i32) -> (i32, i32, i32) {
    %c0_i32 = arith.constant 0 : i32
    %c0_i32_0 = arith.constant 0 : i32
    return %arg0, %arg1, %c0_i32 : i32, i32, i32
  }
}

</mosaic_0001>

<llo_original>
// kernel: tpu_custom_call.1
$region0: #{tpu_custom_call.1}
  #allocation0 [shape = 'u32[]', space=smem, size = 0x4, offset = 0x4, fixed_abs, tag = 'smem constant byte address 0x4 - core index']
  #allocation1 [shape = 'u32[144,128]{1,0:T(1,128)}', space=vmem, size = 0x12000, scoped, tag = 'internal scratch']
  %s0 = inlined_call_operand.vmem [shape: bf16[2,9,9,32], index: 0, kind: input, shape index: {}]
  %s1 = inlined_call_operand.vmem [shape: bf16[2,9,9,32], index: 1, kind: input, shape index: {}]
  %s2 = inlined_call_operand.vmem [shape: f32[2,2,128], index: 2, kind: input, shape index: {}]
  %s3 = inlined_call_operand.vmem [shape: bf16[32,128], index: 3, kind: input, shape index: {}]
  %s4 = inlined_call_operand.vmem [shape: bf16[16,128], index: 4, kind: input, shape index: {}]
  %s5 = inlined_call_operand.vmem [shape: bf16[8,128], index: 5, kind: input, shape index: {}]
  %s6 = inlined_call_operand.vmem [shape: bf16[8,128], index: 6, kind: input, shape index: {}]
  %s7 = inlined_call_operand.vmem [shape: bf16[8,128], index: 7, kind: input, shape index: {}]
  %s8 = inlined_call_operand.vmem [shape: f32[1,128], index: 8, kind: input, shape index: {}]
  %s9 = inlined_call_operand.vmem [shape: bf16[8,128], index: 9, kind: input, shape index: {}]
  %s10 = inlined_call_operand.vmem [shape: f32[1,128], index: 10, kind: input, shape index: {}]
  %s11 = inlined_call_operand.vmem [shape: bf16[256,128], index: 11, kind: input, shape index: {}]
  %s12 = inlined_call_operand.vmem [shape: f32[1,128], index: 12, kind: input, shape index: {}]
  %s13 = inlined_call_operand.hbm [shape: bf16[2,64,128], index: 13, kind: output, shape index: {}]
  %s14 = sld [smem:[#allocation0]]
  $region85: #{tpu_custom_call.1} parent=0
    _
  %s16 = ssub.s32 1, %s14
  %s17 = scalar_select 0, %s16, %s14
  $region1: #{tpu_custom_call.1} parent=0
    #allocation2 [shape = 'u8[32768]{0}', space=vmem, size = 0x8000, scoped, tag = 'output window, operand 0']
    #allocation3 [shape = 's32[2]{0}', space=sflag, size = 0x8, scoped, tag = 'scoped memory for tpu_custom_call.1']
    %18 = vsyncpa [#allocation3], 0
    %s19 = scalar_lea.sflag [#allocation3], 1
    %20 = vsyncpa %s19, 0
    loop: start=0, step=1, limit=4
    $region2: #{tpu_custom_call.1} parent=1 // loop_pre_header
      _
    $region3: #{tpu_custom_call.1} parent=1 // loop_header
      %s22 = sphi 0, %s26
      %p23 = scmp.ge.s32.totalorder %s22, 4
      %s29 = sphi 0, %s41
      %s30 = sphi 0, %s37
      %s31 = sphi 0, %s29
      %s32 = sphi 0, %s30
      %s33 = sphi 0, %s31
      %s34 = sphi 0, %s32
      %s46 = sphi 0, %s48
      %s49 = sphi 0, %s46
      %s50 = sphi 0, %s49
      %s66 = sphi 0, %s50
      %s78 = sphi 0, %s80
      %s81 = sphi 0, %s78
      %s82 = sphi 0, %s81
      %s98 = sphi 0, %s82
      %s104 = sphi 0, %s106
      %s107 = sphi 0, %s104
      %s108 = sphi 0, %s107
      %s124 = sphi 0, %s108
      %s128 = sphi 0, %s128
      %s130 = sphi 0, %s128
      %s131 = sphi 0, %s130
      %s145 = sphi 0, %s131
      %s149 = sphi 0, %s149
      %s151 = sphi 0, %s149
      %s152 = sphi 0, %s151
      %s166 = sphi 0, %s152
      %s170 = sphi 0, %s170
      %s172 = sphi 0, %s170
      %s173 = sphi 0, %s172
      %s187 = sphi 0, %s173
      %s191 = sphi 0, %s191
      %s193 = sphi 0, %s191
      %s194 = sphi 0, %s193
      %s208 = sphi 0, %s194
      %s212 = sphi 0, %s212
      %s214 = sphi 0, %s212
      %s215 = sphi 0, %s214
      %s229 = sphi 0, %s215
      %s233 = sphi 0, %s233
      %s235 = sphi 0, %s233
      %s236 = sphi 0, %s235
      %s250 = sphi 0, %s236
      %s254 = sphi 0, %s254
      %s256 = sphi 0, %s254
      %s257 = sphi 0, %s256
      %s271 = sphi 0, %s257
      %s275 = sphi 0, %s275
      %s277 = sphi 0, %s275
      %s278 = sphi 0, %s277
      %s292 = sphi 0, %s278
      %s296 = sphi 0, %s296
      %s298 = sphi 0, %s296
      %s299 = sphi 0, %s298
      %s313 = sphi 0, %s299
      %s317 = sphi 0, %s317
      %s319 = sphi 0, %s317
      %s320 = sphi 0, %s319
      %s334 = sphi 0, %s320
      %s342 = sphi 0, %s344
      %s345 = sphi 0, %s342
      %s346 = sphi 0, %s345
      %s362 = sphi 0, %s346
    $region4: #{tpu_custom_call.1} parent=1 // loop_header_branch
      %25 = sbr.rel (%p23) target = $region8
    $region5: #{tpu_custom_call.1} parent=1 // loop_body
      %s27 = ssub.s32 %s22, 1
      %s28 = ssub.s32 %s22, 2
      %s35 = sadd.s32 1, %s30
      %p36 = scmp.ge.s32.totalorder %s35, 1
      %s37 = scalar_select %p36, 0, %s35
      %s38 = sadd.s32 1, %s29
      %s39 = scalar_select %p36, %s38, %s29
      %p40 = scmp.ge.s32.totalorder %s39, 2
      %s41 = scalar_select %p40, 0, %s39
      %s42 = ssub.s32 %s29, %s41
      %s43 = ssub.s32 %s30, %s37
      %s44 = sor.u32 %s42, %s43
      %p45 = scmp.eq.s32.totalorder %s44, 0
      %s47 = sadd.s32 %s46, 1
      %s48 = scalar_select %p45, %s46, %s47
      %p51 = pneg %p45
      %p52 = scmp.eq.s32.totalorder %s22, 1
      %p53 = por %p51, %p52
      %p54 = scmp.ne.s32.totalorder %s46, %s49
      %p55 = scmp.eq.s32.totalorder %s22, 0
      %p56 = por %p54, %p55
      %p57 = scmp.ne.s32.totalorder %s46, %s49
      %p58 = scmp.eq.s32.totalorder %s27, 1
      %p59 = por %p57, %p58
      %p60 = scmp.ne.s32.totalorder %s49, %s50
      %p61 = scmp.eq.s32.totalorder %s27, 0
      %p62 = por %p60, %p61
      %p63 = scmp.ne.s32.totalorder %s49, %s50
      %p64 = scmp.eq.s32.totalorder %s28, 1
      %p65 = por %p63, %p64
      %p67 = scmp.ne.s32.totalorder %s50, %s66
      %p68 = scmp.eq.s32.totalorder %s28, 0
      %p69 = por %p67, %p68
      %s70 = sadd.s32 %s30, 1
      %s71 = smul.u32 %s70, 8
      %s72 = sadd.s32 %s37, 1
      %s73 = smul.u32 %s72, 8
      %s74 = ssub.s32 %s29, %s41
      %s75 = ssub.s32 %s71, %s73
      %s76 = sor.u32 %s74, %s75
      %p77 = scmp.eq.s32.totalorder %s76, 0
      %s79 = sadd.s32 %s78, 1
      %s80 = scalar_select %p77, %s78, %s79
      %p83 = pneg %p77
      %p84 = scmp.eq.s32.totalorder %s22, 1
      %p85 = por %p83, %p84
      %p86 = scmp.ne.s32.totalorder %s78, %s81
      %p87 = scmp.eq.s32.totalorder %s22, 0
      %p88 = por %p86, %p87
      %p89 = scmp.ne.s32.totalorder %s78, %s81
      %p90 = scmp.eq.s32.totalorder %s27, 1
      %p91 = por %p89, %p90
      %p92 = scmp.ne.s32.totalorder %s81, %s82
      %p93 = scmp.eq.s32.totalorder %s27, 0
      %p94 = por %p92, %p93
      %p95 = scmp.ne.s32.totalorder %s81, %s82
      %p96 = scmp.eq.s32.totalorder %s28, 1
      %p97 = por %p95, %p96
      %p99 = scmp.ne.s32.totalorder %s82, %s98
      %p100 = scmp.eq.s32.totalorder %s28, 0
      %p101 = por %p99, %p100
      %s102 = ssub.s32 %s29, %s41
      %p103 = scmp.eq.s32.totalorder %s102, 0
      %s105 = sadd.s32 %s104, 1
      %s106 = scalar_select %p103, %s104, %s105
      %p109 = pneg %p103
      %p110 = scmp.eq.s32.totalorder %s22, 1
      %p111 = por %p109, %p110
      %p112 = scmp.ne.s32.totalorder %s104, %s107
      %p113 = scmp.eq.s32.totalorder %s22, 0
      %p114 = por %p112, %p113
      %p115 = scmp.ne.s32.totalorder %s104, %s107
      %p116 = scmp.eq.s32.totalorder %s27, 1
      %p117 = por %p115, %p116
      %p118 = scmp.ne.s32.totalorder %s107, %s108
      %p119 = scmp.eq.s32.totalorder %s27, 0
      %p120 = por %p118, %p119
      %p121 = scmp.ne.s32.totalorder %s107, %s108
      %p122 = scmp.eq.s32.totalorder %s28, 1
      %p123 = por %p121, %p122
      %p125 = scmp.ne.s32.totalorder %s108, %s124
      %p126 = scmp.eq.s32.totalorder %s28, 0
      %p127 = por %p125, %p126
      %s129 = sadd.s32 %s128, 1
      %p132 = scmp.eq.s32.totalorder %s22, 1
      %p133 = scmp.ne.s32.totalorder %s128, %s130
      %p134 = scmp.eq.s32.totalorder %s22, 0
      %p135 = por %p133, %p134
      %p136 = scmp.ne.s32.totalorder %s128, %s130
      %p137 = scmp.eq.s32.totalorder %s27, 1
      %p138 = por %p136, %p137
      %p139 = scmp.ne.s32.totalorder %s130, %s131
      %p140 = scmp.eq.s32.totalorder %s27, 0
      %p141 = por %p139, %p140
      %p142 = scmp.ne.s32.totalorder %s130, %s131
      %p143 = scmp.eq.s32.totalorder %s28, 1
      %p144 = por %p142, %p143
      %p146 = scmp.ne.s32.totalorder %s131, %s145
      %p147 = scmp.eq.s32.totalorder %s28, 0
      %p148 = por %p146, %p147
      %s150 = sadd.s32 %s149, 1
      %p153 = scmp.eq.s32.totalorder %s22, 1
      %p154 = scmp.ne.s32.totalorder %s149, %s151
      %p155 = scmp.eq.s32.totalorder %s22, 0
      %p156 = por %p154, %p155
      %p157 = scmp.ne.s32.totalorder %s149, %s151
      %p158 = scmp.eq.s32.totalorder %s27, 1
      %p159 = por %p157, %p158
      %p160 = scmp.ne.s32.totalorder %s151, %s152
      %p161 = scmp.eq.s32.totalorder %s27, 0
      %p162 = por %p160, %p161
      %p163 = scmp.ne.s32.totalorder %s151, %s152
      %p164 = scmp.eq.s32.totalorder %s28, 1
      %p165 = por %p163, %p164
      %p167 = scmp.ne.s32.totalorder %s152, %s166
      %p168 = scmp.eq.s32.totalorder %s28, 0
      %p169 = por %p167, %p168
      %s171 = sadd.s32 %s170, 1
      %p174 = scmp.eq.s32.totalorder %s22, 1
      %p175 = scmp.ne.s32.totalorder %s170, %s172
      %p176 = scmp.eq.s32.totalorder %s22, 0
      %p177 = por %p175, %p176
      %p178 = scmp.ne.s32.totalorder %s170, %s172
      %p179 = scmp.eq.s32.totalorder %s27, 1
      %p180 = por %p178, %p179
      %p181 = scmp.ne.s32.totalorder %s172, %s173
      %p182 = scmp.eq.s32.totalorder %s27, 0
      %p183 = por %p181, %p182
      %p184 = scmp.ne.s32.totalorder %s172, %s173
      %p185 = scmp.eq.s32.totalorder %s28, 1
      %p186 = por %p184, %p185
      %p188 = scmp.ne.s32.totalorder %s173, %s187
      %p189 = scmp.eq.s32.totalorder %s28, 0
      %p190 = por %p188, %p189
      %s192 = sadd.s32 %s191, 1
      %p195 = scmp.eq.s32.totalorder %s22, 1
      %p196 = scmp.ne.s32.totalorder %s191, %s193
      %p197 = scmp.eq.s32.totalorder %s22, 0
      %p198 = por %p196, %p197
      %p199 = scmp.ne.s32.totalorder %s191, %s193
      %p200 = scmp.eq.s32.totalorder %s27, 1
      %p201 = por %p199, %p200
      %p202 = scmp.ne.s32.totalorder %s193, %s194
      %p203 = scmp.eq.s32.totalorder %s27, 0
      %p204 = por %p202, %p203
      %p205 = scmp.ne.s32.totalorder %s193, %s194
      %p206 = scmp.eq.s32.totalorder %s28, 1
      %p207 = por %p205, %p206
      %p209 = scmp.ne.s32.totalorder %s194, %s208
      %p210 = scmp.eq.s32.totalorder %s28, 0
      %p211 = por %p209, %p210
      %s213 = sadd.s32 %s212, 1
      %p216 = scmp.eq.s32.totalorder %s22, 1
      %p217 = scmp.ne.s32.totalorder %s212, %s214
      %p218 = scmp.eq.s32.totalorder %s22, 0
      %p219 = por %p217, %p218
      %p220 = scmp.ne.s32.totalorder %s212, %s214
      %p221 = scmp.eq.s32.totalorder %s27, 1
      %p222 = por %p220, %p221
      %p223 = scmp.ne.s32.totalorder %s214, %s215
      %p224 = scmp.eq.s32.totalorder %s27, 0
      %p225 = por %p223, %p224
      %p226 = scmp.ne.s32.totalorder %s214, %s215
      %p227 = scmp.eq.s32.totalorder %s28, 1
      %p228 = por %p226, %p227
      %p230 = scmp.ne.s32.totalorder %s215, %s229
      %p231 = scmp.eq.s32.totalorder %s28, 0
      %p232 = por %p230, %p231
      %s234 = sadd.s32 %s233, 1
      %p237 = scmp.eq.s32.totalorder %s22, 1
      %p238 = scmp.ne.s32.totalorder %s233, %s235
      %p239 = scmp.eq.s32.totalorder %s22, 0
      %p240 = por %p238, %p239
      %p241 = scmp.ne.s32.totalorder %s233, %s235
      %p242 = scmp.eq.s32.totalorder %s27, 1
      %p243 = por %p241, %p242
      %p244 = scmp.ne.s32.totalorder %s235, %s236
      %p245 = scmp.eq.s32.totalorder %s27, 0
      %p246 = por %p244, %p245
      %p247 = scmp.ne.s32.totalorder %s235, %s236
      %p248 = scmp.eq.s32.totalorder %s28, 1
      %p249 = por %p247, %p248
      %p251 = scmp.ne.s32.totalorder %s236, %s250
      %p252 = scmp.eq.s32.totalorder %s28, 0
      %p253 = por %p251, %p252
      %s255 = sadd.s32 %s254, 1
      %p258 = scmp.eq.s32.totalorder %s22, 1
      %p259 = scmp.ne.s32.totalorder %s254, %s256
      %p260 = scmp.eq.s32.totalorder %s22, 0
      %p261 = por %p259, %p260
      %p262 = scmp.ne.s32.totalorder %s254, %s256
      %p263 = scmp.eq.s32.totalorder %s27, 1
      %p264 = por %p262, %p263
      %p265 = scmp.ne.s32.totalorder %s256, %s257
      %p266 = scmp.eq.s32.totalorder %s27, 0
      %p267 = por %p265, %p266
      %p268 = scmp.ne.s32.totalorder %s256, %s257
      %p269 = scmp.eq.s32.totalorder %s28, 1
      %p270 = por %p268, %p269
      %p272 = scmp.ne.s32.totalorder %s257, %s271
      %p273 = scmp.eq.s32.totalorder %s28, 0
      %p274 = por %p272, %p273
      %s276 = sadd.s32 %s275, 1
      %p279 = scmp.eq.s32.totalorder %s22, 1
      %p280 = scmp.ne.s32.totalorder %s275, %s277
      %p281 = scmp.eq.s32.totalorder %s22, 0
      %p282 = por %p280, %p281
      %p283 = scmp.ne.s32.totalorder %s275, %s277
      %p284 = scmp.eq.s32.totalorder %s27, 1
      %p285 = por %p283, %p284
      %p286 = scmp.ne.s32.totalorder %s277, %s278
      %p287 = scmp.eq.s32.totalorder %s27, 0
      %p288 = por %p286, %p287
      %p289 = scmp.ne.s32.totalorder %s277, %s278
      %p290 = scmp.eq.s32.totalorder %s28, 1
      %p291 = por %p289, %p290
      %p293 = scmp.ne.s32.totalorder %s278, %s292
      %p294 = scmp.eq.s32.totalorder %s28, 0
      %p295 = por %p293, %p294
      %s297 = sadd.s32 %s296, 1
      %p300 = scmp.eq.s32.totalorder %s22, 1
      %p301 = scmp.ne.s32.totalorder %s296, %s298
      %p302 = scmp.eq.s32.totalorder %s22, 0
      %p303 = por %p301, %p302
      %p304 = scmp.ne.s32.totalorder %s296, %s298
      %p305 = scmp.eq.s32.totalorder %s27, 1
      %p306 = por %p304, %p305
      %p307 = scmp.ne.s32.totalorder %s298, %s299
      %p308 = scmp.eq.s32.totalorder %s27, 0
      %p309 = por %p307, %p308
      %p310 = scmp.ne.s32.totalorder %s298, %s299
      %p311 = scmp.eq.s32.totalorder %s28, 1
      %p312 = por %p310, %p311
      %p314 = scmp.ne.s32.totalorder %s299, %s313
      %p315 = scmp.eq.s32.totalorder %s28, 0
      %p316 = por %p314, %p315
      %s318 = sadd.s32 %s317, 1
      %p321 = scmp.eq.s32.totalorder %s22, 1
      %p322 = scmp.ne.s32.totalorder %s317, %s319
      %p323 = scmp.eq.s32.totalorder %s22, 0
      %p324 = por %p322, %p323
      %p325 = scmp.ne.s32.totalorder %s317, %s319
      %p326 = scmp.eq.s32.totalorder %s27, 1
      %p327 = por %p325, %p326
      %p328 = scmp.ne.s32.totalorder %s319, %s320
      %p329 = scmp.eq.s32.totalorder %s27, 0
      %p330 = por %p328, %p329
      %p331 = scmp.ne.s32.totalorder %s319, %s320
      %p332 = scmp.eq.s32.totalorder %s28, 1
      %p333 = por %p331, %p332
      %p335 = scmp.ne.s32.totalorder %s320, %s334
      %p336 = scmp.eq.s32.totalorder %s28, 0
      %p337 = por %p335, %p336
      %s338 = ssub.s32 %s29, %s41
      %s339 = ssub.s32 %s30, %s37
      %s340 = sor.u32 %s338, %s339
      %p341 = scmp.eq.s32.totalorder %s340, 0
      %s343 = sadd.s32 %s342, 1
      %s344 = scalar_select %p341, %s342, %s343
      %p347 = pneg %p341
      %p348 = scmp.eq.s32.totalorder %s22, 1
      %p349 = por %p347, %p348
      %p350 = scmp.ne.s32.totalorder %s342, %s345
      %p351 = scmp.eq.s32.totalorder %s22, 0
      %p352 = por %p350, %p351
      %p353 = scmp.ne.s32.totalorder %s342, %s345
      %p354 = scmp.eq.s32.totalorder %s27, 1
      %p355 = por %p353, %p354
      %p356 = scmp.ne.s32.totalorder %s345, %s346
      %p357 = scmp.eq.s32.totalorder %s27, 0
      %p358 = por %p356, %p357
      %p359 = scmp.ne.s32.totalorder %s345, %s346
      %p360 = scmp.eq.s32.totalorder %s28, 1
      %p361 = por %p359, %p360
      %p363 = scmp.ne.s32.totalorder %s346, %s362
      %p364 = scmp.eq.s32.totalorder %s28, 0
      %p365 = por %p363, %p364
      %p366 = scmp.le.s32.totalorder 1, %s22
      %p367 = scmp.lt.s32.totalorder %s22, 3
      %p368 = pnand %p366, %p367
      %p369 = pneg %p368
      // Predicated region
      $region9: #{tpu_custom_call.1} parent=5 // pred_check
        _
      $region10: #{tpu_custom_call.1} parent=5 // pred_check_branch
        %371 = sbr.rel (%p368) target = $region12
      $region11: #{tpu_custom_call.1} parent=5 // pred_region
        %s372 = ssub.s32 %s22, 1
        // Predicated region
        $region13: #{tpu_custom_call.1} parent=11 // pred_check
          %p373 = pneg %p141
        $region14: #{tpu_custom_call.1} parent=11 // pred_check_branch
          %375 = sbr.rel (%p373) target = $region16
        $region15: #{tpu_custom_call.1} parent=11 // pred_region
          _
        $region16: #{tpu_custom_call.1} parent=11 // pred_fallthru
          _
        // Predicated region
        $region17: #{tpu_custom_call.1} parent=11 // pred_check
          %p376 = pneg %p162
        $region18: #{tpu_custom_call.1} parent=11 // pred_check_branch
          %378 = sbr.rel (%p376) target = $region20
        $region19: #{tpu_custom_call.1} parent=11 // pred_region
          _
        $region20: #{tpu_custom_call.1} parent=11 // pred_fallthru
          _
        // Predicated region
        $region21: #{tpu_custom_call.1} parent=11 // pred_check
          %p379 = pneg %p183
        $region22: #{tpu_custom_call.1} parent=11 // pred_check_branch
          %381 = sbr.rel (%p379) target = $region24
        $region23: #{tpu_custom_call.1} parent=11 // pred_region
          _
        $region24: #{tpu_custom_call.1} parent=11 // pred_fallthru
          _
        // Predicated region
        $region25: #{tpu_custom_call.1} parent=11 // pred_check
          %p382 = pneg %p204
        $region26: #{tpu_custom_call.1} parent=11 // pred_check_branch
          %384 = sbr.rel (%p382) target = $region28
        $region27: #{tpu_custom_call.1} parent=11 // pred_region
          _
        $region28: #{tpu_custom_call.1} parent=11 // pred_fallthru
          _
        // Predicated region
        $region29: #{tpu_custom_call.1} parent=11 // pred_check
          %p385 = pneg %p225
        $region30: #{tpu_custom_call.1} parent=11 // pred_check_branch
          %387 = sbr.rel (%p385) target = $region32
        $region31: #{tpu_custom_call.1} parent=11 // pred_region
          _
        $region32: #{tpu_custom_call.1} parent=11 // pred_fallthru
          _
        // Predicated region
        $region33: #{tpu_custom_call.1} parent=11 // pred_check
          %p388 = pneg %p246
        $region34: #{tpu_custom_call.1} parent=11 // pred_check_branch
          %390 = sbr.rel (%p388) target = $region36
        $region35: #{tpu_custom_call.1} parent=11 // pred_region
          _
        $region36: #{tpu_custom_call.1} parent=11 // pred_fallthru
          _
        // Predicated region
        $region37: #{tpu_custom_call.1} parent=11 // pred_check
          %p391 = pneg %p267
        $region38: #{tpu_custom_call.1} parent=11 // pred_check_branch
          %393 = sbr.rel (%p391) target = $region40
        $region39: #{tpu_custom_call.1} parent=11 // pred_region
          _
        $region40: #{tpu_custom_call.1} parent=11 // pred_fallthru
          _
        // Predicated region
        $region41: #{tpu_custom_call.1} parent=11 // pred_check
          %p394 = pneg %p288
        $region42: #{tpu_custom_call.1} parent=11 // pred_check_branch
          %396 = sbr.rel (%p394) target = $region44
        $region43: #{tpu_custom_call.1} parent=11 // pred_region
          _
        $region44: #{tpu_custom_call.1} parent=11 // pred_fallthru
          _
        // Predicated region
        $region45: #{tpu_custom_call.1} parent=11 // pred_check
          %p397 = pneg %p309
        $region46: #{tpu_custom_call.1} parent=11 // pred_check_branch
          %399 = sbr.rel (%p397) target = $region48
        $region47: #{tpu_custom_call.1} parent=11 // pred_region
          _
        $region48: #{tpu_custom_call.1} parent=11 // pred_fallthru
          _
        // Predicated region
        $region49: #{tpu_custom_call.1} parent=11 // pred_check
          %p400 = pneg %p330
        $region50: #{tpu_custom_call.1} parent=11 // pred_check_branch
          %402 = sbr.rel (%p400) target = $region52
        $region51: #{tpu_custom_call.1} parent=11 // pred_region
          _
        $region52: #{tpu_custom_call.1} parent=11 // pred_fallthru
          _
      $region12: #{tpu_custom_call.1} parent=5 // pred_fallthru
        _
      %p403 = scmp.lt.s32.totalorder %s22, 2
      // Predicated region
      $region53: #{tpu_custom_call.1} parent=5 // pred_check
        %p404 = pneg %p403
      $region54: #{tpu_custom_call.1} parent=5 // pred_check_branch
        %406 = sbr.rel (%p404) target = $region56
      $region55: #{tpu_custom_call.1} parent=5 // pred_region
        // Predicated region
        $region57: #{tpu_custom_call.1} parent=55 // pred_check
          %p407 = pneg %p56
        $region58: #{tpu_custom_call.1} parent=55 // pred_check_branch
          %409 = sbr.rel (%p407) target = $region60
        $region59: #{tpu_custom_call.1} parent=55 // pred_region
          %s410 = smul.u32 8, %s30
          %s411 = ssub.s32 9, %s410
          %p412 = scmp.lt.s32.totalorder %s411, 8
          %s413 = scalar_select %p412, %s411, 8
          %s414 = smul.u32 64, %s413
          %s415 = smul.u32 %s414, 2
          %p416 = scmp.lt.s32.totalorder %s29, 1
          %s417 = scalar_select %p416, %s29, 1
          %p418 = scmp.lt.s32.totalorder %s410, 8
          %s419 = scalar_select %p418, %s410, 8
          %s420 = smul.addr %s419, 2
          %s421 = smul.addr %s417, 18
          %s422 = sadd.s32 %s420, %s421
          %s423 = smul.addr %s422, 4
          %s424 = scalar_lea.vmem %s0, %s423
          %s425 = smul.u32 8, %s30
          %s426 = ssub.s32 9, %s425
          %p427 = scmp.lt.s32.totalorder %s426, 8
          %s428 = scalar_select %p427, %s426, 8
          %s429 = smul.u32 64, %s428
          %s430 = smul.u32 %s429, 2
        $region60: #{tpu_custom_call.1} parent=55 // pred_fallthru
          _
        // Predicated region
        $region61: #{tpu_custom_call.1} parent=55 // pred_check
          %p431 = pneg %p88
        $region62: #{tpu_custom_call.1} parent=55 // pred_check_branch
          %433 = sbr.rel (%p431) target = $region64
        $region63: #{tpu_custom_call.1} parent=55 // pred_region
          %s434 = sadd.s32 %s30, 1
          %s435 = smul.u32 %s434, 8
          %p436 = scmp.lt.s32.totalorder %s29, 1
          %s437 = scalar_select %p436, %s29, 1
          %p438 = scmp.lt.s32.totalorder %s435, 8
          %s439 = scalar_select %p438, %s435, 8
          %s440 = smul.addr %s439, 2
          %s441 = smul.addr %s437, 18
          %s442 = sadd.s32 %s440, %s441
          %s443 = smul.addr %s442, 4
          %s444 = scalar_lea.vmem %s1, %s443
          %s445 = sadd.s32 %s30, 1
          %s446 = smul.u32 %s445, 8
        $region64: #{tpu_custom_call.1} parent=55 // pred_fallthru
          _
        // Predicated region
        $region65: #{tpu_custom_call.1} parent=55 // pred_check
          %p447 = pneg %p114
        $region66: #{tpu_custom_call.1} parent=55 // pred_check_branch
          %449 = sbr.rel (%p447) target = $region68
        $region67: #{tpu_custom_call.1} parent=55 // pred_region
          %p450 = scmp.lt.s32.totalorder %s29, 1
          %s451 = scalar_select %p450, %s29, 1
          %s452 = smul.addr %s451, 2
          %s453 = scalar_lea.vmem %s2, %s452
        $region68: #{tpu_custom_call.1} parent=55 // pred_fallthru
          _
      $region56: #{tpu_custom_call.1} parent=5 // pred_fallthru
        _
      %p454 = scmp.le.s32.totalorder 1, %s22
      %p455 = scmp.lt.s32.totalorder %s22, 3
      %p456 = pnand %p454, %p455
      %p457 = pneg %p456
      // Predicated region
      $region69: #{tpu_custom_call.1} parent=5 // pred_check
        _
      $region70: #{tpu_custom_call.1} parent=5 // pred_check_branch
        %459 = sbr.rel (%p456) target = $region72
      $region71: #{tpu_custom_call.1} parent=5 // pred_region
        %s460 = ssub.s32 %s22, 1
        %s461 = smul.u32 8, %s32
        %s462 = ssub.s32 9, %s461
        %p463 = scmp.lt.s32.totalorder %s462, 8
        %s464 = scalar_select %p463, %s462, 8
        %s465 = smul.u32 64, %s464
        %s466 = smul.u32 %s465, 2
        %p467 = scmp.lt.s32.totalorder %s31, 1
        %s468 = scalar_select %p467, %s31, 1
        %p469 = scmp.lt.s32.totalorder %s461, 8
        %s470 = scalar_select %p469, %s461, 8
        %s471 = smul.addr %s470, 2
        %s472 = smul.addr %s468, 18
        %s473 = sadd.s32 %s471, %s472
        %s474 = smul.addr %s473, 4
        %s475 = scalar_lea.vmem %s0, %s474
        %p476 = pneg %p62
        %p477 = pneg %p59
        %s478 = sadd.s32 %s32, 1
        %s479 = smul.u32 %s478, 8
        %p480 = scmp.lt.s32.totalorder %s31, 1
        %s481 = scalar_select %p480, %s31, 1
        %p482 = scmp.lt.s32.totalorder %s479, 8
        %s483 = scalar_select %p482, %s479, 8
        %s484 = smul.addr %s483, 2
        %s485 = smul.addr %s481, 18
        %s486 = sadd.s32 %s484, %s485
        %s487 = smul.addr %s486, 4
        %s488 = scalar_lea.vmem %s1, %s487
        %p489 = pneg %p94
        %p490 = pneg %p91
        %p491 = scmp.lt.s32.totalorder %s31, 1
        %s492 = scalar_select %p491, %s31, 1
        %s493 = smul.addr %s492, 2
        %s494 = scalar_lea.vmem %s2, %s493
        %p495 = pneg %p120
        %p496 = pneg %p117
        %p497 = pneg %p141
        %p498 = pneg %p138
        %p499 = pneg %p162
        %p500 = pneg %p159
        %p501 = pneg %p183
        %p502 = pneg %p180
        %p503 = pneg %p204
        %p504 = pneg %p201
        %p505 = pneg %p225
        %p506 = pneg %p222
        %p507 = pneg %p246
        %p508 = pneg %p243
        %p509 = pneg %p267
        %p510 = pneg %p264
        %p511 = pneg %p288
        %p512 = pneg %p285
        %p513 = pneg %p309
        %p514 = pneg %p306
        %p515 = pneg %p330
        %p516 = pneg %p327
        %p517 = pneg %p358
        %p518 = pneg %p355
        %s519 = sand.u32 %s345, 1
        %s520 = scalar_lea.sflag [#allocation3], %s519
        %s521 = sand.u32 %s345, 1
        %s522 = smul.addr %s521, 32
        %s523 = scalar_lea.vmem [#allocation2], %s522
        %s524 = smul.u32 8, %s32
        %s525 = ssub.s32 9, %s524
        %p526 = scmp.lt.s32.totalorder %s525, 8
        %s527 = scalar_select %p526, %s525, 8
        %s528 = smul.u32 64, %s527
        %s529 = smul.u32 %s528, 2
        %p530 = scmp.lt.s32.totalorder %s31, 1
        %s531 = scalar_select %p530, %s31, 1
        %p532 = scmp.lt.s32.totalorder %s524, 8
        %s533 = scalar_select %p532, %s524, 8
        %s534 = smul.addr %s533, 2
        %s535 = smul.addr %s531, 18
        %s536 = sadd.s32 %s534, %s535
        %s537 = smul.addr %s536, 4
        %s538 = scalar_lea.vmem %s0, %s537
        %s539 = smul.u32 8, %s32
        %s540 = ssub.s32 9, %s539
        %p541 = scmp.lt.s32.totalorder %s540, 8
        %s542 = scalar_select %p541, %s540, 8
        %s543 = smul.u32 64, %s542
        %s544 = smul.u32 %s543, 2
        %s545 = sadd.s32 %s32, 1
        %s546 = smul.u32 %s545, 8
        %p547 = scmp.lt.s32.totalorder %s31, 1
        %s548 = scalar_select %p547, %s31, 1
        %p549 = scmp.lt.s32.totalorder %s546, 8
        %s550 = scalar_select %p549, %s546, 8
        %s551 = smul.addr %s550, 2
        %s552 = smul.addr %s548, 18
        %s553 = sadd.s32 %s551, %s552
        %s554 = smul.addr %s553, 4
        %s555 = scalar_lea.vmem %s1, %s554
        %s556 = sadd.s32 %s32, 1
        %s557 = smul.u32 %s556, 8
        %p558 = scmp.lt.s32.totalorder %s31, 1
        %s559 = scalar_select %p558, %s31, 1
        %s560 = smul.addr %s559, 2
        %s561 = scalar_lea.vmem %s2, %s560
        %s562 = smul.u32 8, %s32
        %v564 = vld [vmem:[%s538] sm:$0xf]
        %v565 = vld [vmem:[%s538 + $0x4] sm:$0x1]
        %v566 = vld [vmem:[%s538 + $0x8] sm:$0xf]
        %v567 = vld [vmem:[%s538 + $0xc] sm:$0x1]
        %v568 = vld [vmem:[%s538 + $0x10] sm:$0xf]
        %v569 = vld [vmem:[%s538 + $0x14] sm:$0x1]
        %v570 = vld [vmem:[%s538 + $0x18] sm:$0xf]
        %v571 = vld [vmem:[%s538 + $0x1c] sm:$0x1]
        %v572 = vld [vmem:[%s538 + $0x20] sm:$0xf]
        %v573 = vld [vmem:[%s538 + $0x24] sm:$0x1]
        %v574 = vld [vmem:[%s538 + $0x28] sm:$0xf]
        %v575 = vld [vmem:[%s538 + $0x2c] sm:$0x1]
        %v576 = vld [vmem:[%s538 + $0x30] sm:$0xf]
        %v577 = vld [vmem:[%s538 + $0x34] sm:$0x1]
        %v578 = vld [vmem:[%s538 + $0x38] sm:$0xf]
        %v579 = vld [vmem:[%s538 + $0x3c] sm:$0x1]
        %v580 = vld [vmem:[%s555] sm:$0xf]
        %v581 = vld [vmem:[%s555 + $0x4] sm:$0x1]
        %vm582 = vsmask.f32 3328
        %vm583 = vsmask.f32 7440
        %vm584 = vmor %vm582, %vm583
        %v586 = vshrl.u32 %v564, 16
        %v588 = vrot.slane %v586, 4
        %v589 = vshll.u32 %v564, 16
        %v591 = vrot.slane %v589, 5
        %v592 = vor.u32 %v588, %v591
        %v593 = vrot.slane %v592, 4
        %v595 = vshll.u32 %v565, 16
        %v597 = vrot.slane %v595, 5
        %v598 = vsel %vm584, %v593, %v597
        %v600 = vshrl.u32 %v566, 16
        %v602 = vrot.slane %v600, 4
        %v603 = vshll.u32 %v566, 16
        %v605 = vrot.slane %v603, 5
        %v606 = vor.u32 %v602, %v605
        %v607 = vrot.slane %v606, 4
        %v609 = vshll.u32 %v567, 16
        %v611 = vrot.slane %v609, 5
        %v612 = vsel %vm584, %v607, %v611
        %v614 = vshrl.u32 %v568, 16
        %v616 = vrot.slane %v614, 4
        %v617 = vshll.u32 %v568, 16
        %v619 = vrot.slane %v617, 5
        %v620 = vor.u32 %v616, %v619
        %v621 = vrot.slane %v620, 4
        %v623 = vshll.u32 %v569, 16
        %v625 = vrot.slane %v623, 5
        %v626 = vsel %vm584, %v621, %v625
        %v628 = vshrl.u32 %v570, 16
        %v630 = vrot.slane %v628, 4
        %v631 = vshll.u32 %v570, 16
        %v633 = vrot.slane %v631, 5
        %v634 = vor.u32 %v630, %v633
        %v635 = vrot.slane %v634, 4
        %v637 = vshll.u32 %v571, 16
        %v639 = vrot.slane %v637, 5
        %v640 = vsel %vm584, %v635, %v639
        %v642 = vshrl.u32 %v572, 16
        %v644 = vrot.slane %v642, 4
        %v645 = vshll.u32 %v572, 16
        %v647 = vrot.slane %v645, 5
        %v648 = vor.u32 %v644, %v647
        %v649 = vrot.slane %v648, 4
        %v651 = vshll.u32 %v573, 16
        %v653 = vrot.slane %v651, 5
        %v654 = vsel %vm584, %v649, %v653
        %v656 = vshrl.u32 %v574, 16
        %v658 = vrot.slane %v656, 4
        %v659 = vshll.u32 %v574, 16
        %v661 = vrot.slane %v659, 5
        %v662 = vor.u32 %v658, %v661
        %v663 = vrot.slane %v662, 4
        %v665 = vshll.u32 %v575, 16
        %v667 = vrot.slane %v665, 5
        %v668 = vsel %vm584, %v663, %v667
        %v670 = vshrl.u32 %v576, 16
        %v672 = vrot.slane %v670, 4
        %v673 = vshll.u32 %v576, 16
        %v675 = vrot.slane %v673, 5
        %v676 = vor.u32 %v672, %v675
        %v677 = vrot.slane %v676, 4
        %v679 = vshll.u32 %v577, 16
        %v681 = vrot.slane %v679, 5
        %v682 = vsel %vm584, %v677, %v681
        %v684 = vshrl.u32 %v578, 16
        %v686 = vrot.slane %v684, 4
        %v687 = vshll.u32 %v578, 16
        %v689 = vrot.slane %v687, 5
        %v690 = vor.u32 %v686, %v689
        %v691 = vrot.slane %v690, 4
        %v693 = vshll.u32 %v579, 16
        %v695 = vrot.slane %v693, 5
        %v696 = vsel %vm584, %v691, %v695
        %v698 = vshrl.u32 %v580, 16
        %v700 = vrot.slane %v698, 4
        %v701 = vshll.u32 %v580, 16
        %v703 = vrot.slane %v701, 5
        %v704 = vor.u32 %v700, %v703
        %v705 = vrot.slane %v704, 4
        %v707 = vshll.u32 %v581, 16
        %v709 = vrot.slane %v707, 5
        %v710 = vsel %vm584, %v705, %v709
        %v711 = vld [vmem:[%s3] sm:$0xf]
        %v712 = vld [vmem:[%s3 + $0x4] sm:$0xf]
        %v713 = vld [vmem:[%s3 + $0x8] sm:$0xf]
        %v714 = vld [vmem:[%s3 + $0xc] sm:$0xf]
        %v715 = vld [vmem:[%s4] sm:$0xf]
        %v716 = vld [vmem:[%s4 + $0x4] sm:$0xf]
        %v725 = vunpack.c.l.b16 %v566
        %v726 = vunpack.c.l.b16 %v568
        %v727 = vunpack.c.l.b16 %v570
        %v728 = vunpack.c.l.b16 %v572
        %v729 = vunpack.c.l.b16 %v574
        %v730 = vunpack.c.l.b16 %v576
        %v731 = vunpack.c.l.b16 %v578
        %v732 = vunpack.c.l.b16 %v580
        %v733 = vpack.c.b16 %v726, %v725
        %v734 = vpack.c.b16 %v728, %v727
        %v735 = vpack.c.b16 %v730, %v729
        %v736 = vpack.c.b16 %v732, %v731
        %v739 = vunpack.c.l.b16 %v715
        %v740 = vunpack.c.l.b16 %v716
        %v741 = vpack.c.b16 %v740, %v739
        %vm743 = vcmask 130048
        %v745 = vsel %vm743, %v733, 0
        %v748 = vsel %vm743, %v734, 0
        %v751 = vsel %vm743, %v735, 0
        %v754 = vsel %vm743, %v736, 0
        %756 = vmatprep.subr.bf16.mxu0 0
        %757 = vmatpush1.bf16.msra.mxu0 %v741
        %758 = vmatprep.subr.bf16.mxu0 0
        %759 = vmatpush1.bf16.msra.mxu0 0
        %760 = vmatprep.subr.bf16.mxu0 0
        %761 = vmatpush1.bf16.msra.mxu0 0
        %762 = vmatprep.subr.bf16.mxu0 0
        %763 = vmatpush1.bf16.msra.mxu0 0
        %764 = vmatprep.subr.bf16.mxu0 0
        %765 = vmatpush1.bf16.msra.mxu0 0
        %766 = vmatprep.subr.bf16.mxu0 0
        %767 = vmatpush1.bf16.msra.mxu0 0
        %768 = vmatprep.subr.bf16.mxu0 0
        %769 = vmatpush1.bf16.msra.mxu0 0
        %770 = vmatprep.subr.bf16.mxu0 0
        %771 = vmatpush1.bf16.msra.mxu0 0
        %772 = vmatprep.subr.bf16.mxu0 0
        %773 = vmatpush1.bf16.msra.mxu0 0
        %774 = vmatprep.subr.bf16.mxu0 0
        %775 = vmatpush1.bf16.msra.mxu0 0
        %776 = vmatprep.subr.bf16.mxu0 0
        %777 = vmatpush1.bf16.msra.mxu0 0
        %778 = vmatprep.subr.bf16.mxu0 0
        %779 = vmatpush1.bf16.msra.mxu0 0
        %780 = vmatprep.subr.bf16.mxu0 0
        %781 = vmatpush1.bf16.msra.mxu0 0
        %782 = vmatprep.subr.bf16.mxu0 0
        %783 = vmatpush1.bf16.msra.mxu0 0
        %784 = vmatprep.subr.bf16.mxu0 0
        %785 = vmatpush1.bf16.msra.mxu0 0
        %786 = vmatprep.subr.bf16.mxu0 0
        %787 = vmatpush1.bf16.msra.mxu0 0
        %788 = vmatprep.mubr.bf16.mxu0 0
        %789 = vmatmul.mubr.bf16.gmra.mrb[0].mxu0 %v745
        %v790 = vpop.f32.mrb[0].mxu0
        %v791 = vadd.f32 0.0, %v790
        %v792 = vpop.f32.mrb[0].mxu0
        %v793 = vpop.f32.mrb[0].mxu0
        %v794 = vadd.f32 0.0, %v793
        %v795 = vpop.f32.mrb[0].mxu0
        %796 = vmatprep.mubr.bf16.mxu0 0
        %797 = vmatmul.mubr.bf16.gmra.mrb[0].mxu0 %v748
        %v798 = vpop.f32.mrb[0].mxu0
        %v799 = vadd.f32 0.0, %v798
        %v800 = vpop.f32.mrb[0].mxu0
        %v801 = vpop.f32.mrb[0].mxu0
        %v802 = vadd.f32 0.0, %v801
        %v803 = vpop.f32.mrb[0].mxu0
        %804 = vmatprep.mubr.bf16.mxu0 0
        %805 = vmatmul.mubr.bf16.gmra.mrb[0].mxu0 %v751
        %v806 = vpop.f32.mrb[0].mxu0
        %v807 = vadd.f32 0.0, %v806
        %v808 = vpop.f32.mrb[0].mxu0
        %v809 = vpop.f32.mrb[0].mxu0
        %v810 = vadd.f32 0.0, %v809
        %v811 = vpop.f32.mrb[0].mxu0
        %812 = vmatprep.mubr.bf16.mxu0 0
        %813 = vmatmul.mubr.bf16.gmra.mrb[0].mxu0 %v754
        %v814 = vpop.f32.mrb[0].mxu0
        %v815 = vadd.f32 0.0, %v814
        %v816 = vpop.f32.mrb[0].mxu0
        %v817 = vpop.f32.mrb[0].mxu0
        %v818 = vadd.f32 0.0, %v817
        %v819 = vpop.f32.mrb[0].mxu0
        %820 = vdwg.mxu0
        %v822 = vunpack.c.l.b16 %v564
        %v823 = vpack.c.b16 %v725, %v822
        %v824 = vpack.c.b16 %v727, %v726
        %v825 = vpack.c.b16 %v729, %v728
        %v826 = vpack.c.b16 %v731, %v730
        %v831 = vunpack.c.l.b16 %v711
        %v832 = vunpack.c.l.b16 %v712
        %v833 = vunpack.c.l.b16 %v713
        %v834 = vunpack.c.l.b16 %v714
        %v835 = vpack.c.b16 %v832, %v831
        %v836 = vpack.c.b16 %v834, %v833
        %vm839 = vcmask 261120
        %v841 = vsel %vm839, %v823, 0
        %v844 = vsel %vm839, %v824, 0
        %v847 = vsel %vm839, %v825, 0
        %v850 = vsel %vm839, %v826, 0
        %852 = vmatprep.subr.bf16.mxu0 0
        %853 = vmatpush1.bf16.msra.mxu0 %v835
        %854 = vmatprep.subr.bf16.mxu0 0
        %855 = vmatpush1.bf16.msra.mxu0 %v836
        %856 = vmatprep.subr.bf16.mxu0 0
        %857 = vmatpush1.bf16.msra.mxu0 0
        %858 = vmatprep.subr.bf16.mxu0 0
        %859 = vmatpush1.bf16.msra.mxu0 0
        %860 = vmatprep.subr.bf16.mxu0 0
        %861 = vmatpush1.bf16.msra.mxu0 0
        %862 = vmatprep.subr.bf16.mxu0 0
        %863 = vmatpush1.bf16.msra.mxu0 0
        %864 = vmatprep.subr.bf16.mxu0 0
        %865 = vmatpush1.bf16.msra.mxu0 0
        %866 = vmatprep.subr.bf16.mxu0 0
        %867 = vmatpush1.bf16.msra.mxu0 0
        %868 = vmatprep.subr.bf16.mxu0 0
        %869 = vmatpush1.bf16.msra.mxu0 0
        %870 = vmatprep.subr.bf16.mxu0 0
        %871 = vmatpush1.bf16.msra.mxu0 0
        %872 = vmatprep.subr.bf16.mxu0 0
        %873 = vmatpush1.bf16.msra.mxu0 0
        %874 = vmatprep.subr.bf16.mxu0 0
        %875 = vmatpush1.bf16.msra.mxu0 0
        %876 = vmatprep.subr.bf16.mxu0 0
        %877 = vmatpush1.bf16.msra.mxu0 0
        %878 = vmatprep.subr.bf16.mxu0 0
        %879 = vmatpush1.bf16.msra.mxu0 0
        %880 = vmatprep.subr.bf16.mxu0 0
        %881 = vmatpush1.bf16.msra.mxu0 0
        %882 = vmatprep.subr.bf16.mxu0 0
        %883 = vmatpush1.bf16.msra.mxu0 0
        %884 = vmatprep.mubr.bf16.mxu0 0
        %885 = vmatmul.mubr.bf16.gmra.mrb[0].mxu0 %v841
        %v886 = vpop.f32.mrb[0].mxu0
        %v887 = vadd.f32 %v791, %v886
        %v888 = vpop.f32.mrb[0].mxu0
        %v889 = vpop.f32.mrb[0].mxu0
        %v890 = vadd.f32 %v794, %v889
        %v891 = vpop.f32.mrb[0].mxu0
        %892 = vmatprep.mubr.bf16.mxu0 0
        %893 = vmatmul.mubr.bf16.gmra.mrb[0].mxu0 %v844
        %v894 = vpop.f32.mrb[0].mxu0
        %v895 = vadd.f32 %v799, %v894
        %v896 = vpop.f32.mrb[0].mxu0
        %v897 = vpop.f32.mrb[0].mxu0
        %v898 = vadd.f32 %v802, %v897
        %v899 = vpop.f32.mrb[0].mxu0
        %900 = vmatprep.mubr.bf16.mxu0 0
        %901 = vmatmul.mubr.bf16.gmra.mrb[0].mxu0 %v847
        %v902 = vpop.f32.mrb[0].mxu0
        %v903 = vadd.f32 %v807, %v902
        %v904 = vpop.f32.mrb[0].mxu0
        %v905 = vpop.f32.mrb[0].mxu0
        %v906 = vadd.f32 %v810, %v905
        %v907 = vpop.f32.mrb[0].mxu0
        %908 = vmatprep.mubr.bf16.mxu0 0
        %909 = vmatmul.mubr.bf16.gmra.mrb[0].mxu0 %v850
        %v910 = vpop.f32.mrb[0].mxu0
        %v911 = vadd.f32 %v815, %v910
        %v912 = vpop.f32.mrb[0].mxu0
        %v913 = vpop.f32.mrb[0].mxu0
        %v914 = vadd.f32 %v818, %v913
        %v915 = vpop.f32.mrb[0].mxu0
        %916 = vdwg.mxu0
        %v917 = vld [vmem:[%s5] sm:$0xf]
        %v918 = vunpack.c.l.b16 %v598
        %v919 = vunpack.c.l.b16 %v612
        %v920 = vunpack.c.l.b16 %v626
        %v921 = vunpack.c.l.b16 %v640
        %v922 = vunpack.c.l.b16 %v654
        %v923 = vunpack.c.l.b16 %v668
        %v924 = vunpack.c.l.b16 %v682
        %v925 = vunpack.c.l.b16 %v696
        %v926 = vpack.c.b16 %v919, %v918
        %v927 = vpack.c.b16 %v921, %v920
        %v928 = vpack.c.b16 %v923, %v922
        %v929 = vpack.c.b16 %v925, %v924
        %vm930 = vcmask 64512
        %v932 = vsel %vm930, %v926, 0
        %v935 = vsel %vm930, %v927, 0
        %v938 = vsel %vm930, %v928, 0
        %v941 = vsel %vm930, %v929, 0
        %vm943 = vcmask 1043456
        %v945 = vsel %vm943, %v917, 0
        %947 = vmatprep.subr.bf16.mxu0 0
        %948 = vmatpush1.bf16.msra.mxu0 %v945
        %949 = vmatprep.subr.bf16.mxu0 0
        %950 = vmatpush1.bf16.msra.mxu0 0
        %951 = vmatprep.subr.bf16.mxu0 0
        %952 = vmatpush1.bf16.msra.mxu0 0
        %953 = vmatprep.subr.bf16.mxu0 0
        %954 = vmatpush1.bf16.msra.mxu0 0
        %955 = vmatprep.subr.bf16.mxu0 0
        %956 = vmatpush1.bf16.msra.mxu0 0
        %957 = vmatprep.subr.bf16.mxu0 0
        %958 = vmatpush1.bf16.msra.mxu0 0
        %959 = vmatprep.subr.bf16.mxu0 0
        %960 = vmatpush1.bf16.msra.mxu0 0
        %961 = vmatprep.subr.bf16.mxu0 0
        %962 = vmatpush1.bf16.msra.mxu0 0
        %963 = vmatprep.subr.bf16.mxu0 0
        %964 = vmatpush1.bf16.msra.mxu0 0
        %965 = vmatprep.subr.bf16.mxu0 0
        %966 = vmatpush1.bf16.msra.mxu0 0
        %967 = vmatprep.subr.bf16.mxu0 0
        %968 = vmatpush1.bf16.msra.mxu0 0
        %969 = vmatprep.subr.bf16.mxu0 0
        %970 = vmatpush1.bf16.msra.mxu0 0
        %971 = vmatprep.subr.bf16.mxu0 0
        %972 = vmatpush1.bf16.msra.mxu0 0
        %973 = vmatprep.subr.bf16.mxu0 0
        %974 = vmatpush1.bf16.msra.mxu0 0
        %975 = vmatprep.subr.bf16.mxu0 0
        %976 = vmatpush1.bf16.msra.mxu0 0
        %977 = vmatprep.subr.bf16.mxu0 0
        %978 = vmatpush1.bf16.msra.mxu0 0
        %979 = vmatprep.mubr.bf16.mxu0 0
        %980 = vmatmul.mubr.bf16.gmra.mrb[0].mxu0 %v932
        %v981 = vpop.f32.mrb[0].mxu0
        %v982 = vadd.f32 0.0, %v981
        %v983 = vpop.f32.mrb[0].mxu0
        %v984 = vpop.f32.mrb[0].mxu0
        %v985 = vadd.f32 0.0, %v984
        %v986 = vpop.f32.mrb[0].mxu0
        %987 = vmatprep.mubr.bf16.mxu0 0
        %988 = vmatmul.mubr.bf16.gmra.mrb[0].mxu0 %v935
        %v989 = vpop.f32.mrb[0].mxu0
        %v990 = vadd.f32 0.0, %v989
        %v991 = vpop.f32.mrb[0].mxu0
        %v992 = vpop.f32.mrb[0].mxu0
        %v993 = vadd.f32 0.0, %v992
        %v994 = vpop.f32.mrb[0].mxu0
        %995 = vmatprep.mubr.bf16.mxu0 0
        %996 = vmatmul.mubr.bf16.gmra.mrb[0].mxu0 %v938
        %v997 = vpop.f32.mrb[0].mxu0
        %v998 = vadd.f32 0.0, %v997
        %v999 = vpop.f32.mrb[0].mxu0
        %v1000 = vpop.f32.mrb[0].mxu0
        %v1001 = vadd.f32 0.0, %v1000
        %v1002 = vpop.f32.mrb[0].mxu0
        %1003 = vmatprep.mubr.bf16.mxu0 0
        %1004 = vmatmul.mubr.bf16.gmra.mrb[0].mxu0 %v941
        %v1005 = vpop.f32.mrb[0].mxu0
        %v1006 = vadd.f32 0.0, %v1005
        %v1007 = vpop.f32.mrb[0].mxu0
        %v1008 = vpop.f32.mrb[0].mxu0
        %v1009 = vadd.f32 0.0, %v1008
        %v1010 = vpop.f32.mrb[0].mxu0
        %1011 = vdwg.mxu0
        %v1012 = vadd.f32 %v887, %v982
        %v1013 = vadd.f32 %v890, %v985
        %v1014 = vadd.f32 %v895, %v990
        %v1015 = vadd.f32 %v898, %v993
        %v1016 = vadd.f32 %v903, %v998
        %v1017 = vadd.f32 %v906, %v1001
        %v1018 = vadd.f32 %v911, %v1006
        %v1019 = vadd.f32 %v914, %v1009
        %v1020 = vld [vmem:[%s6] sm:$0xf]
        %1021 = vrot.lane.b32.xlu0 %v926, 112
        %v1022 = vpop.permute.xlu0 %1021
        %1023 = vrot.lane.b32.xlu0 %v927, 112
        %v1024 = vpop.permute.xlu0 %1023
        %1025 = vrot.lane.b32.xlu0 %v928, 112
        %v1026 = vpop.permute.xlu0 %1025
        %1027 = vrot.lane.b32.xlu0 %v929, 112
        %v1028 = vpop.permute.xlu0 %1027
        %v1030 = vsel %vm930, %v1022, 0
        %v1033 = vsel %vm930, %v1024, 0
        %v1036 = vsel %vm930, %v1026, 0
        %v1039 = vsel %vm930, %v1028, 0
        %v1042 = vsel %vm943, %v1020, 0
        %1044 = vmatprep.subr.bf16.mxu0 0
        %1045 = vmatpush1.bf16.msra.mxu0 %v1042
        %1046 = vmatprep.subr.bf16.mxu0 0
        %1047 = vmatpush1.bf16.msra.mxu0 0
        %1048 = vmatprep.subr.bf16.mxu0 0
        %1049 = vmatpush1.bf16.msra.mxu0 0
        %1050 = vmatprep.subr.bf16.mxu0 0
        %1051 = vmatpush1.bf16.msra.mxu0 0
        %1052 = vmatprep.subr.bf16.mxu0 0
        %1053 = vmatpush1.bf16.msra.mxu0 0
        %1054 = vmatprep.subr.bf16.mxu0 0
        %1055 = vmatpush1.bf16.msra.mxu0 0
        %1056 = vmatprep.subr.bf16.mxu0 0
        %1057 = vmatpush1.bf16.msra.mxu0 0
        %1058 = vmatprep.subr.bf16.mxu0 0
        %1059 = vmatpush1.bf16.msra.mxu0 0
        %1060 = vmatprep.subr.bf16.mxu0 0
        %1061 = vmatpush1.bf16.msra.mxu0 0
        %1062 = vmatprep.subr.bf16.mxu0 0
        %1063 = vmatpush1.bf16.msra.mxu0 0
        %1064 = vmatprep.subr.bf16.mxu0 0
        %1065 = vmatpush1.bf16.msra.mxu0 0
        %1066 = vmatprep.subr.bf16.mxu0 0
        %1067 = vmatpush1.bf16.msra.mxu0 0
        %1068 = vmatprep.subr.bf16.mxu0 0
        %1069 = vmatpush1.bf16.msra.mxu0 0
        %1070 = vmatprep.subr.bf16.mxu0 0
        %1071 = vmatpush1.bf16.msra.mxu0 0
        %1072 = vmatprep.subr.bf16.mxu0 0
        %1073 = vmatpush1.bf16.msra.mxu0 0
        %1074 = vmatprep.subr.bf16.mxu0 0
        %1075 = vmatpush1.bf16.msra.mxu0 0
        %1076 = vmatprep.mubr.bf16.mxu0 0
        %1077 = vmatmul.mubr.bf16.gmra.mrb[0].mxu0 %v1030
        %v1078 = vpop.f32.mrb[0].mxu0
        %v1079 = vadd.f32 0.0, %v1078
        %v1080 = vpop.f32.mrb[0].mxu0
        %v1081 = vpop.f32.mrb[0].mxu0
        %v1082 = vadd.f32 0.0, %v1081
        %v1083 = vpop.f32.mrb[0].mxu0
        %1084 = vmatprep.mubr.bf16.mxu0 0
        %1085 = vmatmul.mubr.bf16.gmra.mrb[0].mxu0 %v1033
        %v1086 = vpop.f32.mrb[0].mxu0
        %v1087 = vadd.f32 0.0, %v1086
        %v1088 = vpop.f32.mrb[0].mxu0
        %v1089 = vpop.f32.mrb[0].mxu0
        %v1090 = vadd.f32 0.0, %v1089
        %v1091 = vpop.f32.mrb[0].mxu0
        %1092 = vmatprep.mubr.bf16.mxu0 0
        %1093 = vmatmul.mubr.bf16.gmra.mrb[0].mxu0 %v1036
        %v1094 = vpop.f32.mrb[0].mxu0
        %v1095 = vadd.f32 0.0, %v1094
        %v1096 = vpop.f32.mrb[0].mxu0
        %v1097 = vpop.f32.mrb[0].mxu0
        %v1098 = vadd.f32 0.0, %v1097
        %v1099 = vpop.f32.mrb[0].mxu0
        %1100 = vmatprep.mubr.bf16.mxu0 0
        %1101 = vmatmul.mubr.bf16.gmra.mrb[0].mxu0 %v1039
        %v1102 = vpop.f32.mrb[0].mxu0
        %v1103 = vadd.f32 0.0, %v1102
        %v1104 = vpop.f32.mrb[0].mxu0
        %v1105 = vpop.f32.mrb[0].mxu0
        %v1106 = vadd.f32 0.0, %v1105
        %v1107 = vpop.f32.mrb[0].mxu0
        %1108 = vdwg.mxu0
        %v1109 = vadd.f32 %v1012, %v1079
        %v1110 = vadd.f32 %v1013, %v1082
        %v1111 = vadd.f32 %v1014, %v1087
        %v1112 = vadd.f32 %v1015, %v1090
        %v1113 = vadd.f32 %v1016, %v1095
        %v1114 = vadd.f32 %v1017, %v1098
        %v1115 = vadd.f32 %v1018, %v1103
        %v1116 = vadd.f32 %v1019, %v1106
        %v1117 = vld [vmem:[%s7] sm:$0xf]
        %v1118 = vunpack.c.l.b16 %v710
        %v1119 = vpack.c.b16 %v920, %v919
        %v1120 = vpack.c.b16 %v922, %v921
        %v1121 = vpack.c.b16 %v924, %v923
        %v1122 = vpack.c.b16 %v1118, %v925
        %v1124 = vsel %vm930, %v1119, 0
        %v1127 = vsel %vm930, %v1120, 0
        %v1130 = vsel %vm930, %v1121, 0
        %v1133 = vsel %vm930, %v1122, 0
        %v1136 = vsel %vm943, %v1117, 0
        %1138 = vmatprep.subr.bf16.mxu0 0
        %1139 = vmatpush1.bf16.msra.mxu0 %v1136
        %1140 = vmatprep.subr.bf16.mxu0 0
        %1141 = vmatpush1.bf16.msra.mxu0 0
        %1142 = vmatprep.subr.bf16.mxu0 0
        %1143 = vmatpush1.bf16.msra.mxu0 0
        %1144 = vmatprep.subr.bf16.mxu0 0
        %1145 = vmatpush1.bf16.msra.mxu0 0
        %1146 = vmatprep.subr.bf16.mxu0 0
        %1147 = vmatpush1.bf16.msra.mxu0 0
        %1148 = vmatprep.subr.bf16.mxu0 0
        %1149 = vmatpush1.bf16.msra.mxu0 0
        %1150 = vmatprep.subr.bf16.mxu0 0
        %1151 = vmatpush1.bf16.msra.mxu0 0
        %1152 = vmatprep.subr.bf16.mxu0 0
        %1153 = vmatpush1.bf16.msra.mxu0 0
        %1154 = vmatprep.subr.bf16.mxu0 0
        %1155 = vmatpush1.bf16.msra.mxu0 0
        %1156 = vmatprep.subr.bf16.mxu0 0
        %1157 = vmatpush1.bf16.msra.mxu0 0
        %1158 = vmatprep.subr.bf16.mxu0 0
        %1159 = vmatpush1.bf16.msra.mxu0 0
        %1160 = vmatprep.subr.bf16.mxu0 0
        %1161 = vmatpush1.bf16.msra.mxu0 0
        %1162 = vmatprep.subr.bf16.mxu0 0
        %1163 = vmatpush1.bf16.msra.mxu0 0
        %1164 = vmatprep.subr.bf16.mxu0 0
        %1165 = vmatpush1.bf16.msra.mxu0 0
        %1166 = vmatprep.subr.bf16.mxu0 0
        %1167 = vmatpush1.bf16.msra.mxu0 0
        %1168 = vmatprep.subr.bf16.mxu0 0
        %1169 = vmatpush1.bf16.msra.mxu0 0
        %1170 = vmatprep.mubr.bf16.mxu0 0
        %1171 = vmatmul.mubr.bf16.gmra.mrb[0].mxu0 %v1124
        %v1172 = vpop.f32.mrb[0].mxu0
        %v1173 = vadd.f32 0.0, %v1172
        %v1174 = vpop.f32.mrb[0].mxu0
        %v1175 = vpop.f32.mrb[0].mxu0
        %v1176 = vadd.f32 0.0, %v1175
        %v1177 = vpop.f32.mrb[0].mxu0
        %1178 = vmatprep.mubr.bf16.mxu0 0
        %1179 = vmatmul.mubr.bf16.gmra.mrb[0].mxu0 %v1127
        %v1180 = vpop.f32.mrb[0].mxu0
        %v1181 = vadd.f32 0.0, %v1180
        %v1182 = vpop.f32.mrb[0].mxu0
        %v1183 = vpop.f32.mrb[0].mxu0
        %v1184 = vadd.f32 0.0, %v1183
        %v1185 = vpop.f32.mrb[0].mxu0
        %1186 = vmatprep.mubr.bf16.mxu0 0
        %1187 = vmatmul.mubr.bf16.gmra.mrb[0].mxu0 %v1130
        %v1188 = vpop.f32.mrb[0].mxu0
        %v1189 = vadd.f32 0.0, %v1188
        %v1190 = vpop.f32.mrb[0].mxu0
        %v1191 = vpop.f32.mrb[0].mxu0
        %v1192 = vadd.f32 0.0, %v1191
        %v1193 = vpop.f32.mrb[0].mxu0
        %1194 = vmatprep.mubr.bf16.mxu0 0
        %1195 = vmatmul.mubr.bf16.gmra.mrb[0].mxu0 %v1133
        %v1196 = vpop.f32.mrb[0].mxu0
        %v1197 = vadd.f32 0.0, %v1196
        %v1198 = vpop.f32.mrb[0].mxu0
        %v1199 = vpop.f32.mrb[0].mxu0
        %v1200 = vadd.f32 0.0, %v1199
        %v1201 = vpop.f32.mrb[0].mxu0
        %1202 = vdwg.mxu0
        %v1203 = vadd.f32 %v1109, %v1173
        %v1204 = vadd.f32 %v1110, %v1176
        %v1205 = vadd.f32 %v1111, %v1181
        %v1206 = vadd.f32 %v1112, %v1184
        %v1207 = vadd.f32 %v1113, %v1189
        %v1208 = vadd.f32 %v1114, %v1192
        %v1209 = vadd.f32 %v1115, %v1197
        %v1210 = vadd.f32 %v1116, %v1200
        %v1211 = vld [vmem:[%s8] sm:$0x1]
        %v1213 = vlaneseq
        %v1214 = vshrl.u32 %v1213, 7
        %v1215 = vsub.s32 0, %v1214
        %v1216 = vrot.slane %v1211, %v1215
        %v1218 = vadd.f32 %v1203, %v1216
        %v1219 = vadd.f32 %v1204, %v1216
        %v1220 = vadd.f32 %v1205, %v1216
        %v1221 = vadd.f32 %v1206, %v1216
        %v1222 = vadd.f32 %v1207, %v1216
        %v1223 = vadd.f32 %v1208, %v1216
        %v1224 = vadd.f32 %v1209, %v1216
        %v1225 = vadd.f32 %v1210, %v1216
        %v1226 = vmul.f32 %v1218, 0.5
        %v1227 = vmul.f32 %v1219, 0.5
        %v1228 = vmul.f32 %v1220, 0.5
        %v1229 = vmul.f32 %v1221, 0.5
        %v1230 = vmul.f32 %v1222, 0.5
        %v1231 = vmul.f32 %v1223, 0.5
        %v1232 = vmul.f32 %v1224, 0.5
        %v1233 = vmul.f32 %v1225, 0.5
        %v1234 = vtanh.pop %v1226
        %v1235 = vtanh.pop %v1227
        %v1236 = vtanh.pop %v1228
        %v1237 = vtanh.pop %v1229
        %v1238 = vtanh.pop %v1230
        %v1239 = vtanh.pop %v1231
        %v1240 = vtanh.pop %v1232
        %v1241 = vtanh.pop %v1233
        %v1242 = vadd.f32 %v1234, 1.0
        %v1243 = vadd.f32 %v1235, 1.0
        %v1244 = vadd.f32 %v1236, 1.0
        %v1245 = vadd.f32 %v1237, 1.0
        %v1246 = vadd.f32 %v1238, 1.0
        %v1247 = vadd.f32 %v1239, 1.0
        %v1248 = vadd.f32 %v1240, 1.0
        %v1249 = vadd.f32 %v1241, 1.0
        %v1250 = vmul.f32 %v1226, %v1242
        %v1251 = vmul.f32 %v1227, %v1243
        %v1252 = vmul.f32 %v1228, %v1244
        %v1253 = vmul.f32 %v1229, %v1245
        %v1254 = vmul.f32 %v1230, %v1246
        %v1255 = vmul.f32 %v1231, %v1247
        %v1256 = vmul.f32 %v1232, %v1248
        %v1257 = vmul.f32 %v1233, %v1249
        %1258 = vrot.lane.b32.xlu0 %v598, 8
        %v1259 = vpop.permute.xlu0 %1258
        %1260 = vrot.lane.b32.xlu0 %v612, 8
        %v1261 = vpop.permute.xlu0 %1260
        %1262 = vrot.lane.b32.xlu0 %v626, 8
        %v1263 = vpop.permute.xlu0 %1262
        %1264 = vrot.lane.b32.xlu0 %v640, 8
        %v1265 = vpop.permute.xlu0 %1264
        %1266 = vrot.lane.b32.xlu0 %v654, 8
        %v1267 = vpop.permute.xlu0 %1266
        %1268 = vrot.lane.b32.xlu0 %v668, 8
        %v1269 = vpop.permute.xlu0 %1268
        %1270 = vrot.lane.b32.xlu0 %v682, 8
        %v1271 = vpop.permute.xlu0 %1270
        %1272 = vrot.lane.b32.xlu0 %v696, 8
        %v1273 = vpop.permute.xlu0 %1272
        %v1282 = vmax.bf16 %v564, %v1259
        %v1283 = vmax.bf16 %v566, %v1261
        %v1284 = vmax.bf16 %v568, %v1263
        %v1285 = vmax.bf16 %v570, %v1265
        %v1286 = vmax.bf16 %v572, %v1267
        %v1287 = vmax.bf16 %v574, %v1269
        %v1288 = vmax.bf16 %v576, %v1271
        %v1289 = vmax.bf16 %v578, %v1273
        %1290 = vrot.lane.b32.xlu0 %v710, 8
        %v1291 = vpop.permute.xlu0 %1290
        %v1293 = vmax.bf16 %v580, %v1291
        %1302 = vrot.lane.b32.xlu0 %v1283, 16
        %v1303 = vpop.permute.xlu0 %1302
        %1304 = vrot.lane.b32.xlu0 %v1284, 16
        %v1305 = vpop.permute.xlu0 %1304
        %1306 = vrot.lane.b32.xlu0 %v1285, 16
        %v1307 = vpop.permute.xlu0 %1306
        %1308 = vrot.lane.b32.xlu0 %v1286, 16
        %v1309 = vpop.permute.xlu0 %1308
        %1310 = vrot.lane.b32.xlu0 %v1287, 16
        %v1311 = vpop.permute.xlu0 %1310
        %1312 = vrot.lane.b32.xlu0 %v1288, 16
        %v1313 = vpop.permute.xlu0 %1312
        %1314 = vrot.lane.b32.xlu0 %v1289, 16
        %v1315 = vpop.permute.xlu0 %1314
        %1316 = vrot.lane.b32.xlu0 %v1293, 16
        %v1317 = vpop.permute.xlu0 %1316
        %v1326 = vmax.bf16 %v1282, %v1303
        %v1327 = vmax.bf16 %v1283, %v1305
        %v1328 = vmax.bf16 %v1284, %v1307
        %v1329 = vmax.bf16 %v1285, %v1309
        %v1330 = vmax.bf16 %v1286, %v1311
        %v1331 = vmax.bf16 %v1287, %v1313
        %v1332 = vmax.bf16 %v1288, %v1315
        %v1333 = vmax.bf16 %v1289, %v1317
        %v1334 = vld [vmem:[%s9] sm:$0xf]
        %v1335 = vld [vmem:[%s10] sm:$0x1]
        %v1337 = vlaneseq
        %v1338 = vshrl.u32 %v1337, 7
        %v1339 = vsub.s32 0, %v1338
        %v1340 = vrot.slane %v1335, %v1339
        %v1350 = vunpack.c.l.b16 %v1326
        %v1351 = vunpack.c.l.b16 %v1327
        %v1352 = vunpack.c.l.b16 %v1328
        %v1353 = vunpack.c.l.b16 %v1329
        %v1354 = vunpack.c.l.b16 %v1330
        %v1355 = vunpack.c.l.b16 %v1331
        %v1356 = vunpack.c.l.b16 %v1332
        %v1357 = vunpack.c.l.b16 %v1333
        %v1358 = vpack.c.b16 %v1351, %v1350
        %v1359 = vpack.c.b16 %v1353, %v1352
        %v1360 = vpack.c.b16 %v1355, %v1354
        %v1361 = vpack.c.b16 %v1357, %v1356
        %1362 = vrot.lane.b32.xlu0 %v1358, 104
        %v1363 = vpop.permute.xlu0 %1362
        %1364 = vrot.lane.b32.xlu0 %v1359, 104
        %v1365 = vpop.permute.xlu0 %1364
        %1366 = vrot.lane.b32.xlu0 %v1360, 104
        %v1367 = vpop.permute.xlu0 %1366
        %1368 = vrot.lane.b32.xlu0 %v1361, 104
        %v1369 = vpop.permute.xlu0 %1368
        %v1371 = vsel %vm930, %v1363, 0
        %v1374 = vsel %vm930, %v1365, 0
        %v1377 = vsel %vm930, %v1367, 0
        %v1380 = vsel %vm930, %v1369, 0
        %v1383 = vsel %vm943, %v1334, 0
        %1385 = vmatprep.subr.bf16.mxu0 0
        %1386 = vmatpush1.bf16.msra.mxu0 %v1383
        %1387 = vmatprep.subr.bf16.mxu0 0
        %1388 = vmatpush1.bf16.msra.mxu0 0
        %1389 = vmatprep.subr.bf16.mxu0 0
        %1390 = vmatpush1.bf16.msra.mxu0 0
        %1391 = vmatprep.subr.bf16.mxu0 0
        %1392 = vmatpush1.bf16.msra.mxu0 0
        %1393 = vmatprep.subr.bf16.mxu0 0
        %1394 = vmatpush1.bf16.msra.mxu0 0
        %1395 = vmatprep.subr.bf16.mxu0 0
        %1396 = vmatpush1.bf16.msra.mxu0 0
        %1397 = vmatprep.subr.bf16.mxu0 0
        %1398 = vmatpush1.bf16.msra.mxu0 0
        %1399 = vmatprep.subr.bf16.mxu0 0
        %1400 = vmatpush1.bf16.msra.mxu0 0
        %1401 = vmatprep.subr.bf16.mxu0 0
        %1402 = vmatpush1.bf16.msra.mxu0 0
        %1403 = vmatprep.subr.bf16.mxu0 0
        %1404 = vmatpush1.bf16.msra.mxu0 0
        %1405 = vmatprep.subr.bf16.mxu0 0
        %1406 = vmatpush1.bf16.msra.mxu0 0
        %1407 = vmatprep.subr.bf16.mxu0 0
        %1408 = vmatpush1.bf16.msra.mxu0 0
        %1409 = vmatprep.subr.bf16.mxu0 0
        %1410 = vmatpush1.bf16.msra.mxu0 0
        %1411 = vmatprep.subr.bf16.mxu0 0
        %1412 = vmatpush1.bf16.msra.mxu0 0
        %1413 = vmatprep.subr.bf16.mxu0 0
        %1414 = vmatpush1.bf16.msra.mxu0 0
        %1415 = vmatprep.subr.bf16.mxu0 0
        %1416 = vmatpush1.bf16.msra.mxu0 0
        %1417 = vmatprep.mubr.bf16.mxu0 0
        %1418 = vmatmul.mubr.bf16.gmra.mrb[0].mxu0 %v1371
        %v1419 = vpop.f32.mrb[0].mxu0
        %v1420 = vadd.f32 %v1340, %v1419
        %v1421 = vpop.f32.mrb[0].mxu0
        %v1422 = vpop.f32.mrb[0].mxu0
        %v1423 = vadd.f32 %v1340, %v1422
        %v1424 = vpop.f32.mrb[0].mxu0
        %1425 = vmatprep.mubr.bf16.mxu0 0
        %1426 = vmatmul.mubr.bf16.gmra.mrb[0].mxu0 %v1374
        %v1427 = vpop.f32.mrb[0].mxu0
        %v1428 = vadd.f32 %v1340, %v1427
        %v1429 = vpop.f32.mrb[0].mxu0
        %v1430 = vpop.f32.mrb[0].mxu0
        %v1431 = vadd.f32 %v1340, %v1430
        %v1432 = vpop.f32.mrb[0].mxu0
        %1433 = vmatprep.mubr.bf16.mxu0 0
        %1434 = vmatmul.mubr.bf16.gmra.mrb[0].mxu0 %v1377
        %v1435 = vpop.f32.mrb[0].mxu0
        %v1436 = vadd.f32 %v1340, %v1435
        %v1437 = vpop.f32.mrb[0].mxu0
        %v1438 = vpop.f32.mrb[0].mxu0
        %v1439 = vadd.f32 %v1340, %v1438
        %v1440 = vpop.f32.mrb[0].mxu0
        %1441 = vmatprep.mubr.bf16.mxu0 0
        %1442 = vmatmul.mubr.bf16.gmra.mrb[0].mxu0 %v1380
        %v1443 = vpop.f32.mrb[0].mxu0
        %v1444 = vadd.f32 %v1340, %v1443
        %v1445 = vpop.f32.mrb[0].mxu0
        %v1446 = vpop.f32.mrb[0].mxu0
        %v1447 = vadd.f32 %v1340, %v1446
        %v1448 = vpop.f32.mrb[0].mxu0
        %1449 = vdwg.mxu0
        %v1450 = vmul.f32 %v1420, 0.5
        %v1451 = vmul.f32 %v1423, 0.5
        %v1452 = vmul.f32 %v1428, 0.5
        %v1453 = vmul.f32 %v1431, 0.5
        %v1454 = vmul.f32 %v1436, 0.5
        %v1455 = vmul.f32 %v1439, 0.5
        %v1456 = vmul.f32 %v1444, 0.5
        %v1457 = vmul.f32 %v1447, 0.5
        %v1458 = vtanh.pop %v1450
        %v1459 = vtanh.pop %v1451
        %v1460 = vtanh.pop %v1452
        %v1461 = vtanh.pop %v1453
        %v1462 = vtanh.pop %v1454
        %v1463 = vtanh.pop %v1455
        %v1464 = vtanh.pop %v1456
        %v1465 = vtanh.pop %v1457
        %v1466 = vadd.f32 %v1458, 1.0
        %v1467 = vadd.f32 %v1459, 1.0
        %v1468 = vadd.f32 %v1460, 1.0
        %v1469 = vadd.f32 %v1461, 1.0
        %v1470 = vadd.f32 %v1462, 1.0
        %v1471 = vadd.f32 %v1463, 1.0
        %v1472 = vadd.f32 %v1464, 1.0
        %v1473 = vadd.f32 %v1465, 1.0
        %v1474 = vmul.f32 %v1450, %v1466
        %v1475 = vmul.f32 %v1451, %v1467
        %v1476 = vmul.f32 %v1452, %v1468
        %v1477 = vmul.f32 %v1453, %v1469
        %v1478 = vmul.f32 %v1454, %v1470
        %v1479 = vmul.f32 %v1455, %v1471
        %v1480 = vmul.f32 %v1456, %v1472
        %v1481 = vmul.f32 %v1457, %v1473
        %v1482 = vld [vmem:[%s561] sm:$0x3]
        %v1483 = vlaneseq
        %v1484 = vshrl.u32 %v1483, 7
        %v1485 = vsub.s32 0, %v1484
        %v1486 = vrot.slane %v1482, %v1485
        %v1487 = vmul.f32 %v1250, %v1486
        %v1488 = vmul.f32 %v1251, %v1486
        %v1489 = vmul.f32 %v1252, %v1486
        %v1490 = vmul.f32 %v1253, %v1486
        %v1491 = vmul.f32 %v1254, %v1486
        %v1492 = vmul.f32 %v1255, %v1486
        %v1493 = vmul.f32 %v1256, %v1486
        %v1494 = vmul.f32 %v1257, %v1486
        %v1495 = vpack.c.bf16 %v1488, %v1487
        %v1496 = vpack.c.bf16 %v1490, %v1489
        %v1497 = vpack.c.bf16 %v1492, %v1491
        %v1498 = vpack.c.bf16 %v1494, %v1493
        %v1499 = vlaneseq
        %v1500 = vshrl.u32 %v1499, 7
        %v1501 = vsub.s32 1, %v1500
        %v1502 = vrot.slane %v1482, %v1501
        %v1503 = vmul.f32 %v1474, %v1502
        %v1504 = vmul.f32 %v1475, %v1502
        %v1505 = vmul.f32 %v1476, %v1502
        %v1506 = vmul.f32 %v1477, %v1502
        %v1507 = vmul.f32 %v1478, %v1502
        %v1508 = vmul.f32 %v1479, %v1502
        %v1509 = vmul.f32 %v1480, %v1502
        %v1510 = vmul.f32 %v1481, %v1502
        %v1511 = vpack.c.bf16 %v1504, %v1503
        %v1512 = vpack.c.bf16 %v1506, %v1505
        %v1513 = vpack.c.bf16 %v1508, %v1507
        %v1514 = vpack.c.bf16 %v1510, %v1509
        %v1515 = vld [vmem:[%s11] sm:$0xf]
        %v1516 = vld [vmem:[%s11 + $0x4] sm:$0xf]
        %v1517 = vld [vmem:[%s11 + $0x8] sm:$0xf]
        %v1518 = vld [vmem:[%s11 + $0xc] sm:$0xf]
        %v1519 = vld [vmem:[%s11 + $0x10] sm:$0xf]
        %v1520 = vld [vmem:[%s11 + $0x14] sm:$0xf]
        %v1521 = vld [vmem:[%s11 + $0x18] sm:$0xf]
        %v1522 = vld [vmem:[%s11 + $0x1c] sm:$0xf]
        %v1523 = vld [vmem:[%s11 + $0x20] sm:$0xf]
        %v1524 = vld [vmem:[%s11 + $0x24] sm:$0xf]
        %v1525 = vld [vmem:[%s11 + $0x28] sm:$0xf]
        %v1526 = vld [vmem:[%s11 + $0x2c] sm:$0xf]
        %v1527 = vld [vmem:[%s11 + $0x30] sm:$0xf]
        %v1528 = vld [vmem:[%s11 + $0x34] sm:$0xf]
        %v1529 = vld [vmem:[%s11 + $0x38] sm:$0xf]
        %v1530 = vld [vmem:[%s11 + $0x3c] sm:$0xf]
        %v1531 = vld [vmem:[%s11 + $0x40] sm:$0xf]
        %v1532 = vld [vmem:[%s11 + $0x44] sm:$0xf]
        %v1533 = vld [vmem:[%s11 + $0x48] sm:$0xf]
        %v1534 = vld [vmem:[%s11 + $0x4c] sm:$0xf]
        %v1535 = vld [vmem:[%s11 + $0x50] sm:$0xf]
        %v1536 = vld [vmem:[%s11 + $0x54] sm:$0xf]
        %v1537 = vld [vmem:[%s11 + $0x58] sm:$0xf]
        %v1538 = vld [vmem:[%s11 + $0x5c] sm:$0xf]
        %v1539 = vld [vmem:[%s11 + $0x60] sm:$0xf]
        %v1540 = vld [vmem:[%s11 + $0x64] sm:$0xf]
        %v1541 = vld [vmem:[%s11 + $0x68] sm:$0xf]
        %v1542 = vld [vmem:[%s11 + $0x6c] sm:$0xf]
        %v1543 = vld [vmem:[%s11 + $0x70] sm:$0xf]
        %v1544 = vld [vmem:[%s11 + $0x74] sm:$0xf]
        %v1545 = vld [vmem:[%s11 + $0x78] sm:$0xf]
        %v1546 = vld [vmem:[%s11 + $0x7c] sm:$0xf]
        %v1547 = vld [vmem:[%s12] sm:$0x1]
        %v1549 = vlaneseq
        %v1550 = vshrl.u32 %v1549, 7
        %v1551 = vsub.s32 0, %v1550
        %v1552 = vrot.slane %v1547, %v1551
        %v1586 = vunpack.c.l.b16 %v1515
        %v1587 = vunpack.c.l.b16 %v1516
        %v1588 = vunpack.c.l.b16 %v1517
        %v1589 = vunpack.c.l.b16 %v1518
        %v1590 = vunpack.c.l.b16 %v1519
        %v1591 = vunpack.c.l.b16 %v1520
        %v1592 = vunpack.c.l.b16 %v1521
        %v1593 = vunpack.c.l.b16 %v1522
        %v1594 = vunpack.c.l.b16 %v1523
        %v1595 = vunpack.c.l.b16 %v1524
        %v1596 = vunpack.c.l.b16 %v1525
        %v1597 = vunpack.c.l.b16 %v1526
        %v1598 = vunpack.c.l.b16 %v1527
        %v1599 = vunpack.c.l.b16 %v1528
        %v1600 = vunpack.c.l.b16 %v1529
        %v1601 = vunpack.c.l.b16 %v1530
        %v1602 = vunpack.c.l.b16 %v1531
        %v1603 = vunpack.c.l.b16 %v1532
        %v1604 = vunpack.c.l.b16 %v1533
        %v1605 = vunpack.c.l.b16 %v1534
        %v1606 = vunpack.c.l.b16 %v1535
        %v1607 = vunpack.c.l.b16 %v1536
        %v1608 = vunpack.c.l.b16 %v1537
        %v1609 = vunpack.c.l.b16 %v1538
        %v1610 = vunpack.c.l.b16 %v1539
        %v1611 = vunpack.c.l.b16 %v1540
        %v1612 = vunpack.c.l.b16 %v1541
        %v1613 = vunpack.c.l.b16 %v1542
        %v1614 = vunpack.c.l.b16 %v1543
        %v1615 = vunpack.c.l.b16 %v1544
        %v1616 = vunpack.c.l.b16 %v1545
        %v1617 = vunpack.c.l.b16 %v1546
        %v1618 = vpack.c.b16 %v1587, %v1586
        %v1619 = vpack.c.b16 %v1589, %v1588
        %v1620 = vpack.c.b16 %v1591, %v1590
        %v1621 = vpack.c.b16 %v1593, %v1592
        %v1622 = vpack.c.b16 %v1595, %v1594
        %v1623 = vpack.c.b16 %v1597, %v1596
        %v1624 = vpack.c.b16 %v1599, %v1598
        %v1625 = vpack.c.b16 %v1601, %v1600
        %v1626 = vpack.c.b16 %v1603, %v1602
        %v1627 = vpack.c.b16 %v1605, %v1604
        %v1628 = vpack.c.b16 %v1607, %v1606
        %v1629 = vpack.c.b16 %v1609, %v1608
        %v1630 = vpack.c.b16 %v1611, %v1610
        %v1631 = vpack.c.b16 %v1613, %v1612
        %v1632 = vpack.c.b16 %v1615, %v1614
        %v1633 = vpack.c.b16 %v1617, %v1616
        %1650 = vmatprep.subr.bf16.mxu0 0
        %1651 = vmatpush1.bf16.msra.mxu0 %v1618
        %1652 = vmatprep.subr.bf16.mxu0 0
        %1653 = vmatpush1.bf16.msra.mxu0 %v1619
        %1654 = vmatprep.subr.bf16.mxu0 0
        %1655 = vmatpush1.bf16.msra.mxu0 %v1620
        %1656 = vmatprep.subr.bf16.mxu0 0
        %1657 = vmatpush1.bf16.msra.mxu0 %v1621
        %1658 = vmatprep.subr.bf16.mxu0 0
        %1659 = vmatpush1.bf16.msra.mxu0 %v1622
        %1660 = vmatprep.subr.bf16.mxu0 0
        %1661 = vmatpush1.bf16.msra.mxu0 %v1623
        %1662 = vmatprep.subr.bf16.mxu0 0
        %1663 = vmatpush1.bf16.msra.mxu0 %v1624
        %1664 = vmatprep.subr.bf16.mxu0 0
        %1665 = vmatpush1.bf16.msra.mxu0 %v1625
        %1666 = vmatprep.subr.bf16.mxu0 0
        %1667 = vmatpush1.bf16.msra.mxu0 %v1626
        %1668 = vmatprep.subr.bf16.mxu0 0
        %1669 = vmatpush1.bf16.msra.mxu0 %v1627
        %1670 = vmatprep.subr.bf16.mxu0 0
        %1671 = vmatpush1.bf16.msra.mxu0 %v1628
        %1672 = vmatprep.subr.bf16.mxu0 0
        %1673 = vmatpush1.bf16.msra.mxu0 %v1629
        %1674 = vmatprep.subr.bf16.mxu0 0
        %1675 = vmatpush1.bf16.msra.mxu0 %v1630
        %1676 = vmatprep.subr.bf16.mxu0 0
        %1677 = vmatpush1.bf16.msra.mxu0 %v1631
        %1678 = vmatprep.subr.bf16.mxu0 0
        %1679 = vmatpush1.bf16.msra.mxu0 %v1632
        %1680 = vmatprep.subr.bf16.mxu0 0
        %1681 = vmatpush1.bf16.msra.mxu0 %v1633
        %1682 = vmatprep.mubr.bf16.mxu0 %v1511
        %1683 = vmatmul.mubr.bf16.gmra.mrb[0].mxu0 %v1495
        %v1684 = vpop.f32.mrb[0].mxu0
        %v1685 = vadd.f32 %v1552, %v1684
        %v1686 = vpop.f32.mrb[0].mxu0
        %v1687 = vpop.f32.mrb[0].mxu0
        %v1688 = vadd.f32 %v1552, %v1687
        %v1689 = vpop.f32.mrb[0].mxu0
        %1690 = vmatprep.mubr.bf16.mxu0 %v1512
        %1691 = vmatmul.mubr.bf16.gmra.mrb[0].mxu0 %v1496
        %v1692 = vpop.f32.mrb[0].mxu0
        %v1693 = vadd.f32 %v1552, %v1692
        %v1694 = vpop.f32.mrb[0].mxu0
        %v1695 = vpop.f32.mrb[0].mxu0
        %v1696 = vadd.f32 %v1552, %v1695
        %v1697 = vpop.f32.mrb[0].mxu0
        %1698 = vmatprep.mubr.bf16.mxu0 %v1513
        %1699 = vmatmul.mubr.bf16.gmra.mrb[0].mxu0 %v1497
        %v1700 = vpop.f32.mrb[0].mxu0
        %v1701 = vadd.f32 %v1552, %v1700
        %v1702 = vpop.f32.mrb[0].mxu0
        %v1703 = vpop.f32.mrb[0].mxu0
        %v1704 = vadd.f32 %v1552, %v1703
        %v1705 = vpop.f32.mrb[0].mxu0
        %1706 = vmatprep.mubr.bf16.mxu0 %v1514
        %1707 = vmatmul.mubr.bf16.gmra.mrb[0].mxu0 %v1498
        %v1708 = vpop.f32.mrb[0].mxu0
        %v1709 = vadd.f32 %v1552, %v1708
        %v1710 = vpop.f32.mrb[0].mxu0
        %v1711 = vpop.f32.mrb[0].mxu0
        %v1712 = vadd.f32 %v1552, %v1711
        %v1713 = vpop.f32.mrb[0].mxu0
        %1714 = vdwg.mxu0
        %v1715 = vmul.f32 %v1685, 0.5
        %v1716 = vmul.f32 %v1688, 0.5
        %v1717 = vmul.f32 %v1693, 0.5
        %v1718 = vmul.f32 %v1696, 0.5
        %v1719 = vmul.f32 %v1701, 0.5
        %v1720 = vmul.f32 %v1704, 0.5
        %v1721 = vmul.f32 %v1709, 0.5
        %v1722 = vmul.f32 %v1712, 0.5
        %v1723 = vtanh.pop %v1715
        %v1724 = vtanh.pop %v1716
        %v1725 = vtanh.pop %v1717
        %v1726 = vtanh.pop %v1718
        %v1727 = vtanh.pop %v1719
        %v1728 = vtanh.pop %v1720
        %v1729 = vtanh.pop %v1721
        %v1730 = vtanh.pop %v1722
        %v1731 = vadd.f32 %v1723, 1.0
        %v1732 = vadd.f32 %v1724, 1.0
        %v1733 = vadd.f32 %v1725, 1.0
        %v1734 = vadd.f32 %v1726, 1.0
        %v1735 = vadd.f32 %v1727, 1.0
        %v1736 = vadd.f32 %v1728, 1.0
        %v1737 = vadd.f32 %v1729, 1.0
        %v1738 = vadd.f32 %v1730, 1.0
        %v1739 = vmul.f32 %v1715, %v1731
        %v1740 = vmul.f32 %v1716, %v1732
        %v1741 = vmul.f32 %v1717, %v1733
        %v1742 = vmul.f32 %v1718, %v1734
        %v1743 = vmul.f32 %v1719, %v1735
        %v1744 = vmul.f32 %v1720, %v1736
        %v1745 = vmul.f32 %v1721, %v1737
        %v1746 = vmul.f32 %v1722, %v1738
        %v1747 = vpack.c.bf16 %v1740, %v1739
        %v1748 = vpack.c.bf16 %v1742, %v1741
        %v1749 = vpack.c.bf16 %v1744, %v1743
        %v1750 = vpack.c.bf16 %v1746, %v1745
        %v1755 = vunpack.c.l.b16 %v1747
        %v1756 = vunpack.c.h.b16 %v1747
        %v1757 = vunpack.c.l.b16 %v1748
        %v1758 = vunpack.c.h.b16 %v1748
        %v1759 = vunpack.c.l.b16 %v1749
        %v1760 = vunpack.c.h.b16 %v1749
        %v1761 = vunpack.c.l.b16 %v1750
        %v1762 = vunpack.c.h.b16 %v1750
        %v1763 = vpack.c.b16 %v1755, %v1755
        %v1764 = vpack.c.b16 %v1756, %v1756
        %v1765 = vpack.c.b16 %v1757, %v1757
        %v1766 = vpack.c.b16 %v1758, %v1758
        %v1767 = vpack.c.b16 %v1759, %v1759
        %v1768 = vpack.c.b16 %v1760, %v1760
        %v1769 = vpack.c.b16 %v1761, %v1761
        %v1770 = vpack.c.b16 %v1762, %v1762
        %1779 = vst [vmem:[%s523] sm:$0xf] %v1763
        %1780 = vst [vmem:[%s523 + $0x4] sm:$0xf] %v1764
        %1781 = vst [vmem:[%s523 + $0x8] sm:$0xf] %v1765
        %1782 = vst [vmem:[%s523 + $0xc] sm:$0xf] %v1766
        %1783 = vst [vmem:[%s523 + $0x10] sm:$0xf] %v1767
        %1784 = vst [vmem:[%s523 + $0x14] sm:$0xf] %v1768
        %1785 = vst [vmem:[%s523 + $0x18] sm:$0xf] %v1769
        %1786 = vst [vmem:[%s523 + $0x1c] sm:$0xf] %v1770
        %s1787 = sand.u32 %s345, 1
        %s1788 = scalar_lea.sflag [#allocation3], %s1787
        %s1789 = sand.u32 %s345, 1
        %s1790 = smul.addr %s1789, 32
        %s1791 = scalar_lea.vmem [#allocation2], %s1790
        // Predicated region
        $region73: #{tpu_custom_call.1} parent=71 // pred_check
          %p1792 = pneg %p355
        $region74: #{tpu_custom_call.1} parent=71 // pred_check_branch
          %1794 = sbr.rel (%p1792) target = $region76
        $region75: #{tpu_custom_call.1} parent=71 // pred_region
          %s1795 = smul.u32 8, %s32
          %s1797 = ssub.s32 512, 512
          %1798 = vsyncadd %s1788, %s1797
          %s1799 = smul.addr %s31, 8
          %s1800 = sadd.s32 %s1795, %s1799
          %s1801 = smul.addr %s1800, 64
          %s1802 = scalar_lea.hbm %s13, %s1801
          %s1803 = sshll.u32 %s1791, 4
          %s1804 = int_to_ptr.vmem [resolvable:$true] %s1803
          %1809 = dma.vmem_to_hbm [thread:$0]  %s1804, 512, %s1802, %s1788, 64, 64, 4
        $region76: #{tpu_custom_call.1} parent=71 // pred_fallthru
          _
      $region72: #{tpu_custom_call.1} parent=5 // pred_fallthru
        _
      %p1810 = scmp.le.s32.totalorder 2, %s22
      // Predicated region
      $region77: #{tpu_custom_call.1} parent=5 // pred_check
        %p1811 = pneg %p1810
      $region78: #{tpu_custom_call.1} parent=5 // pred_check_branch
        %1813 = sbr.rel (%p1811) target = $region80
      $region79: #{tpu_custom_call.1} parent=5 // pred_region
        %s1814 = ssub.s32 %s22, 2
        // Predicated region
        $region81: #{tpu_custom_call.1} parent=79 // pred_check
          %p1815 = pneg %p361
        $region82: #{tpu_custom_call.1} parent=79 // pred_check_branch
          %1817 = sbr.rel (%p1815) target = $region84
        $region83: #{tpu_custom_call.1} parent=79 // pred_region
          %s1818 = sand.u32 %s346, 1
          %s1819 = scalar_lea.sflag [#allocation3], %s1818
          %s1820 = sand.u32 %s346, 1
          %s1821 = smul.addr %s1820, 32
          %s1822 = scalar_lea.vmem [#allocation2], %s1821
          %1823 = dma.done %s1819, 512
        $region84: #{tpu_custom_call.1} parent=79 // pred_fallthru
          _
      $region80: #{tpu_custom_call.1} parent=5 // pred_fallthru
        _
    $region6: #{tpu_custom_call.1} parent=1 // loop_footer
      %s26 = sadd.s32 1, %s22
    $region7: #{tpu_custom_call.1} parent=1 // loop_footer_branch
      %21 = sbr.rel target = $region3
    $region8: #{tpu_custom_call.1} parent=1 // loop_exit
      _
    %1824 = vsyncpa [#allocation3], 1
    %s1825 = scalar_lea.sflag [#allocation3], 1
    %1826 = vsyncpa %s1825, 1

</llo_original>
